<compile_context>
chip_gen: v6e
topology: v6e:2x2x1
jax: 0.10.0
libtpu: 0.0.40
codegen_flags: <defaults>
</compile_context>

<pallas_src>
import math
import jax
import jax.numpy as jnp
from jax.experimental import pallas as pl
from jax.experimental.pallas import tpu as pltpu

EPS = 1e-5  # PyTorch nn.LayerNorm default


# ----------------------------- kernel body ----------------------------------

def _layernorm(x, gamma, beta):
    mu = jnp.mean(x, axis=-1, keepdims=True)
    var = jnp.mean((x - mu) ** 2, axis=-1, keepdims=True)
    return (x - mu) * jax.lax.rsqrt(var + EPS) * gamma + beta


def make_encoder_kernel(h, d_k, d_v, n_layers):
    scale = 1.0 / math.sqrt(d_k)

    def kernel(x_ref,
               w_in_ref, b_in_ref, g_in_ref, be_in_ref,
               wqkv_ref, bqkv_ref, wo_ref, bo_ref, g1_ref, be1_ref,
               w1_ref, b1_ref, w2_ref, b2_ref, g2_ref, be2_ref,
               o_ref, act_ref):
        n = pl.program_id(1)          # layer index (streamed weights)

        # ---- input projection: LayerNorm(Dropout(ReLU(Linear(x)))) -- first layer step only
        @pl.when(n == 0)
        def _():
            x = x_ref[0]                                               # (S, d_in)
            y = jnp.dot(x, w_in_ref[...],
                        preferred_element_type=jnp.float32) + b_in_ref[...]
            act_ref[...] = _layernorm(jnp.maximum(y, 0.0), g_in_ref[...], be_in_ref[...])

        out = act_ref[...]                                             # (S, d_model)

        # ---- multi-head self-attention (fused QKV, per-batch so no mask needed) ----
        qkv = jnp.dot(out, wqkv_ref[0],
                      preferred_element_type=jnp.float32) + bqkv_ref[0]
        q = qkv[:, : h * d_k]
        k = qkv[:, h * d_k: 2 * h * d_k]
        v = qkv[:, 2 * h * d_k:]

        head_ctx = []                 # in-register per-head contexts (no VMEM scratch)
        for i in range(h):            # small static unroll (h=4 here)
            qh = q[:, i * d_k:(i + 1) * d_k]                           # (S, d_k)
            kh = k[:, i * d_k:(i + 1) * d_k]
            vh = v[:, i * d_v:(i + 1) * d_v]
            s = jnp.dot(qh, kh.T, preferred_element_type=jnp.float32) * scale
            s = s - jnp.max(s, axis=-1, keepdims=True)
            p = jnp.exp(s)
            p = p * pl.reciprocal(jnp.sum(p, axis=-1, keepdims=True), approx=True)
            head_ctx.append(jnp.dot(p, vh, preferred_element_type=jnp.float32))
        ctx = jnp.concatenate(head_ctx, axis=-1)                       # (S, h*d_v)

        att = jnp.dot(ctx, wo_ref[0],
                      preferred_element_type=jnp.float32) + bo_ref[0]
        out = _layernorm(out + att, g1_ref[0], be1_ref[0])             # residual + post-LN

        # ---- position-wise feed forward ----
        hid = jnp.maximum(
            jnp.dot(out, w1_ref[0], preferred_element_type=jnp.float32) + b1_ref[0],
            0.0)
        ff = jnp.dot(hid, w2_ref[0], preferred_element_type=jnp.float32) + b2_ref[0]
        out = _layernorm(out + ff, g2_ref[0], be2_ref[0])              # residual + post-LN

        act_ref[...] = out            # carry activation to the next layer grid step

        @pl.when(n == n_layers - 1)
        def _():
            o_ref[0] = out            # single HBM writeback per batch

    return kernel


# ----------------------------- pallas_call glue ------------------------------

def _resident_spec(shape):
    """Weight resident across the whole grid (in_proj params)."""
    zeros = (0,) * len(shape)
    return pl.BlockSpec(shape, lambda b, n: zeros)


def _layer_spec(shape):
    """Per-layer stacked weight (N, ...) streamed along the layer grid axis."""
    block = (1,) + tuple(shape[1:])
    zeros = (0,) * (len(shape) - 1)
    return pl.BlockSpec(block, lambda b, n: (n,) + zeros)


def transformer_encoder(x, params, h, d_k, d_v):
    B, S, d_in = x.shape
    w_in, b_in, g_in, be_in = params["in_proj"]
    d_model = w_in.shape[1]
    layers = params["layers"]
    N = len(layers)
    d_ff = layers[0]["w1"].shape[1]

    # Wrapper-side weight packing: fuse Wq|Wk|Wv and stack every per-layer tensor over N.
    wqkv = jnp.stack([jnp.concatenate([lp["wq"], lp["wk"], lp["wv"]], axis=1)
                      for lp in layers])
    bqkv = jnp.stack([jnp.concatenate([lp["bq"], lp["bk"], lp["bv"]], axis=1)
                      for lp in layers])
    wo = jnp.stack([lp["wo"] for lp in layers]); bo = jnp.stack([lp["bo"] for lp in layers])
    g1 = jnp.stack([lp["g1"] for lp in layers]); be1 = jnp.stack([lp["be1"] for lp in layers])
    w1 = jnp.stack([lp["w1"] for lp in layers]); b1 = jnp.stack([lp["b1"] for lp in layers])
    w2 = jnp.stack([lp["w2"] for lp in layers]); b2 = jnp.stack([lp["b2"] for lp in layers])
    g2 = jnp.stack([lp["g2"] for lp in layers]); be2 = jnp.stack([lp["be2"] for lp in layers])

    args = [x, w_in, b_in, g_in, be_in,
            wqkv, bqkv, wo, bo, g1, be1, w1, b1, w2, b2, g2, be2]

    in_specs = [pl.BlockSpec((1, S, d_in), lambda b, n: (b, 0, 0)),
                _resident_spec(w_in.shape), _resident_spec(b_in.shape),
                _resident_spec(g_in.shape), _resident_spec(be_in.shape)]
    in_specs += [_layer_spec(a.shape) for a in
                 (wqkv, bqkv, wo, bo, g1, be1, w1, b1, w2, b2, g2, be2)]

    # --- VMEM budget (streamed layer weights double-buffered) + cost estimate ---
    def _nbytes(a):
        return int(a.size) * a.dtype.itemsize

    layer_bytes = sum(_nbytes(a) for a in
                      (wqkv, bqkv, wo, bo, g1, be1, w1, b1, w2, b2, g2, be2)) // N
    resident_bytes = (2 * layer_bytes
                      + sum(_nbytes(a) for a in (w_in, b_in, g_in, be_in))
                      + 2 * (S * d_in + S * d_model) * 4   # x / out blocks, double-buffered
                      + S * d_model * 4)                    # activation scratch
    vmem_limit = int(min(64 * 1024 * 1024, max(16 * 1024 * 1024, 4 * resident_bytes)))

    flops_layer = (2 * S * d_model * 3 * h * d_k            # fused QKV
                   + 2 * h * S * S * d_k + 2 * h * S * S * d_v  # scores + context
                   + 2 * S * h * d_v * d_model               # Wo
                   + 2 * S * d_model * d_ff + 2 * S * d_ff * d_model)  # FFN
    cost = pl.CostEstimate(
        flops=int(B * (2 * S * d_in * d_model + N * flops_layer)),
        transcendentals=int(B * N * h * S * S),
        bytes_accessed=int(_nbytes(x) + B * N * layer_bytes
                           + sum(_nbytes(a) for a in (w_in, b_in, g_in, be_in))
                           + B * S * d_model * 4))

    out = pl.pallas_call(
        make_encoder_kernel(h, d_k, d_v, N),
        out_shape=jax.ShapeDtypeStruct((B, S, d_model), jnp.float32),
        grid=(B, N),
        in_specs=in_specs,
        # NOTE: d_model < 128 here -> masked stores on the (small) output tile; at production
        # d_model (multiple of 128) the output store is lane-dense with no change needed.
        out_specs=pl.BlockSpec((1, S, d_model), lambda b, n: (b, 0, 0)),
        scratch_shapes=[pltpu.VMEM((S, d_model), jnp.float32)],   # activation carried over layers
        compiler_params=pltpu.CompilerParams(
            dimension_semantics=("parallel", "arbitrary"),
            vmem_limit_bytes=vmem_limit),
        cost_estimate=cost,
    )(*args)
    return out


# ----------------------------- params + reference ---------------------------

def init_params(key, d_in, d_model, d_k, d_v, h, d_ff, N):
    keys = iter(jax.random.split(key, 1 + N * 6))

    def lin(din, dout):
        w = jax.random.normal(next(keys), (din, dout), jnp.float32) * 0.02
        b = jnp.zeros((1, dout), jnp.float32)
        return w, b

    def ln(d):
        return jnp.ones((1, d), jnp.float32), jnp.zeros((1, d), jnp.float32)

    w, b = lin(d_in, d_model)
    g, be = ln(d_model)
    params = {"in_proj": (w, b, g, be), "layers": []}
    for _ in range(N):
        wq, bq = lin(d_model, h * d_k)
        wk, bk = lin(d_model, h * d_k)
        wv, bv = lin(d_model, h * d_v)
        wo, bo = lin(h * d_v, d_model)
        w1, b1 = lin(d_model, d_ff)
        w2, b2 = lin(d_ff, d_model)
        g1, be1 = ln(d_model)
        g2, be2 = ln(d_model)
        params["layers"].append(dict(wq=wq, bq=bq, wk=wk, bk=bk, wv=wv, bv=bv,
                                     wo=wo, bo=bo, g1=g1, be1=be1,
                                     w1=w1, b1=b1, w2=w2, b2=b2, g2=g2, be2=be2))
    return params


def reference(x, params, h, d_k, d_v):
    def ln(x, g, b):
        mu = jnp.mean(x, -1, keepdims=True)
        var = jnp.mean((x - mu) ** 2, -1, keepdims=True)
        return (x - mu) * jax.lax.rsqrt(var + EPS) * g + b

    w, b, g, be = params["in_proj"]
    out = ln(jnp.maximum(x @ w + b, 0.0), g, be)
    for lp in params["layers"]:
        B, S, _ = out.shape
        q = (out @ lp["wq"] + lp["bq"]).reshape(B, S, h, d_k).transpose(0, 2, 1, 3)
        k = (out @ lp["wk"] + lp["bk"]).reshape(B, S, h, d_k).transpose(0, 2, 1, 3)
        v = (out @ lp["wv"] + lp["bv"]).reshape(B, S, h, d_v).transpose(0, 2, 1, 3)
        att = jax.nn.softmax(q @ k.transpose(0, 1, 3, 2) / math.sqrt(d_k), axis=-1)
        o = (att @ v).transpose(0, 2, 1, 3).reshape(B, S, h * d_v)
        out = ln(out + (o @ lp["wo"] + lp["bo"]), lp["g1"], lp["be1"])
        hid = jnp.maximum(out @ lp["w1"] + lp["b1"], 0.0)
        out = ln(out + (hid @ lp["w2"] + lp["b2"]), lp["g2"], lp["be2"])
    return out


# ----------------------------------- main -----------------------------------

if __name__ == "__main__":
    # small config consistent with TransformerEncoder(N, d_in, d_model, d_k, d_v, h, d_ff)
    B, S = 2, 8
    D_IN, D_MODEL, D_K, D_V, H, D_FF, N = 64, 32, 8, 8, 4, 64, 2

    root = jax.random.PRNGKey(0)
    kx, kp = jax.random.split(root)
    x = jax.random.normal(kx, (B, S, D_IN), jnp.float32)
    params = init_params(kp, D_IN, D_MODEL, D_K, D_V, H, D_FF, N)

    out = transformer_encoder(x, params, H, D_K, D_V)
    out = jax.block_until_ready(out)

    ref = reference(x, params, H, D_K, D_V)
    assert out.shape == (B, S, D_MODEL)
    assert jnp.allclose(out, ref, rtol=2e-3, atol=2e-3), "mismatch vs JAX reference"
    print("KERNEL_OK")
</pallas_src>

<mosaic_0001>
module attributes {stable_mosaic.version = 11 : i64} {
  func.func @kernel(%arg0: i32, %arg1: i32, %arg2: memref<1x8x64xf32, #tpu.memory_space<vmem>>, %arg3: memref<64x32xf32, #tpu.memory_space<vmem>>, %arg4: memref<1x32xf32, #tpu.memory_space<vmem>>, %arg5: memref<1x32xf32, #tpu.memory_space<vmem>>, %arg6: memref<1x32xf32, #tpu.memory_space<vmem>>, %arg7: memref<1x32x96xf32, #tpu.memory_space<vmem>>, %arg8: memref<1x1x96xf32, #tpu.memory_space<vmem>>, %arg9: memref<1x32x32xf32, #tpu.memory_space<vmem>>, %arg10: memref<1x1x32xf32, #tpu.memory_space<vmem>>, %arg11: memref<1x1x32xf32, #tpu.memory_space<vmem>>, %arg12: memref<1x1x32xf32, #tpu.memory_space<vmem>>, %arg13: memref<1x32x64xf32, #tpu.memory_space<vmem>>, %arg14: memref<1x1x64xf32, #tpu.memory_space<vmem>>, %arg15: memref<1x64x32xf32, #tpu.memory_space<vmem>>, %arg16: memref<1x1x32xf32, #tpu.memory_space<vmem>>, %arg17: memref<1x1x32xf32, #tpu.memory_space<vmem>>, %arg18: memref<1x1x32xf32, #tpu.memory_space<vmem>>, %arg19: memref<1x8x32xf32, #tpu.memory_space<vmem>>, %arg20: memref<8x32xf32, #tpu.memory_space<vmem>>) attributes {dimension_semantics = [#tpu.dimension_semantics<parallel>, #tpu.dimension_semantics<arbitrary>], iteration_bounds = array<i64: 2, 2>, scalar_prefetch = 0 : i64, scratch_operands = 1 : i64, tpu.core_type = #tpu.core_type<tc>, window_params = [{transform_indices = @transform_0, window_bounds = array<i64: 1, 8, 64>}, {pipeline_mode = #tpu.pipeline_mode<synchronous>, transform_indices = @transform_1, window_bounds = array<i64: 64, 32>}, {pipeline_mode = #tpu.pipeline_mode<synchronous>, transform_indices = @transform_2, window_bounds = array<i64: 1, 32>}, {pipeline_mode = #tpu.pipeline_mode<synchronous>, transform_indices = @transform_3, window_bounds = array<i64: 1, 32>}, {pipeline_mode = #tpu.pipeline_mode<synchronous>, transform_indices = @transform_4, window_bounds = array<i64: 1, 32>}, {transform_indices = @transform_5, window_bounds = array<i64: 1, 32, 96>}, {transform_indices = @transform_6, window_bounds = array<i64: 1, 1, 96>}, {transform_indices = @transform_7, window_bounds = array<i64: 1, 32, 32>}, {transform_indices = @transform_8, window_bounds = array<i64: 1, 1, 32>}, {transform_indices = @transform_9, window_bounds = array<i64: 1, 1, 32>}, {transform_indices = @transform_10, window_bounds = array<i64: 1, 1, 32>}, {transform_indices = @transform_11, window_bounds = array<i64: 1, 32, 64>}, {transform_indices = @transform_12, window_bounds = array<i64: 1, 1, 64>}, {transform_indices = @transform_13, window_bounds = array<i64: 1, 64, 32>}, {transform_indices = @transform_14, window_bounds = array<i64: 1, 1, 32>}, {transform_indices = @transform_15, window_bounds = array<i64: 1, 1, 32>}, {transform_indices = @transform_16, window_bounds = array<i64: 1, 1, 32>}, {transform_indices = @transform_17, window_bounds = array<i64: 1, 8, 32>}]} {
    %c0_i32 = arith.constant 0 : i32
    %0 = arith.cmpi eq, %arg1, %c0_i32 : i32
    %1 = arith.extui %0 : i1 to i32
    %c0_i32_0 = arith.constant 0 : i32
    %2 = arith.cmpi ne, %1, %c0_i32_0 : i32
    scf.if %2 {
      %c0_75 = arith.constant 0 : index
      %c0_76 = arith.constant 0 : index
      %c0_77 = arith.constant 0 : index
      %168 = vector.load %arg2[%c0_75, %c0_76, %c0_77] : memref<1x8x64xf32, #tpu.memory_space<vmem>>, vector<1x8x64xf32>
      %169 = vector.shape_cast %168 : vector<1x8x64xf32> to vector<8x64xf32>
      %c0_78 = arith.constant 0 : index
      %c0_79 = arith.constant 0 : index
      %170 = vector.load %arg3[%c0_78, %c0_79] : memref<64x32xf32, #tpu.memory_space<vmem>>, vector<64x32xf32>
      %cst_80 = arith.constant dense<0.000000e+00> : vector<8x32xf32>
      %171 = tpu.matmul %169, %170, %cst_80 {dimension_numbers = #tpu.dot_dimension_numbers<[1], [0], [0], [1], [0, 0, 1, 1], [], []>} : vector<8x64xf32>, vector<64x32xf32>, vector<8x32xf32> -> vector<8x32xf32>
      %c0_81 = arith.constant 0 : index
      %c0_82 = arith.constant 0 : index
      %172 = vector.load %arg4[%c0_81, %c0_82] : memref<1x32xf32, #tpu.memory_space<vmem>>, vector<1x32xf32>
      %173 = vector.broadcast %172 : vector<1x32xf32> to vector<8x32xf32>
      %174 = arith.addf %171, %173 : vector<8x32xf32>
      %cst_83 = arith.constant 0.000000e+00 : f32
      %175 = vector.broadcast %cst_83 : f32 to vector<8x32xf32>
      %176 = arith.maximumf %174, %175 : vector<8x32xf32>
      %c0_84 = arith.constant 0 : index
      %c0_85 = arith.constant 0 : index
      %177 = vector.load %arg5[%c0_84, %c0_85] : memref<1x32xf32, #tpu.memory_space<vmem>>, vector<1x32xf32>
      %c0_86 = arith.constant 0 : index
      %c0_87 = arith.constant 0 : index
      %178 = vector.load %arg6[%c0_86, %c0_87] : memref<1x32xf32, #tpu.memory_space<vmem>>, vector<1x32xf32>
      %cst_88 = arith.constant dense<0.000000e+00> : vector<8xf32>
      %179 = vector.multi_reduction <add>, %176, %cst_88 [1] : vector<8x32xf32> to vector<8xf32>
      %180 = vector.shape_cast %179 : vector<8xf32> to vector<8x1xf32>
      %cst_89 = arith.constant 3.200000e+01 : f32
      %181 = vector.broadcast %cst_89 : f32 to vector<8x1xf32>
      %182 = arith.divf %180, %181 : vector<8x1xf32>
      %183 = vector.broadcast %182 : vector<8x1xf32> to vector<8x32xf32>
      %184 = arith.subf %176, %183 : vector<8x32xf32>
      %185 = arith.mulf %184, %184 : vector<8x32xf32>
      %cst_90 = arith.constant dense<0.000000e+00> : vector<8xf32>
      %186 = vector.multi_reduction <add>, %185, %cst_90 [1] : vector<8x32xf32> to vector<8xf32>
      %187 = vector.shape_cast %186 : vector<8xf32> to vector<8x1xf32>
      %cst_91 = arith.constant 3.200000e+01 : f32
      %188 = vector.broadcast %cst_91 : f32 to vector<8x1xf32>
      %189 = arith.divf %187, %188 : vector<8x1xf32>
      %190 = vector.broadcast %182 : vector<8x1xf32> to vector<8x32xf32>
      %191 = arith.subf %176, %190 : vector<8x32xf32>
      %cst_92 = arith.constant 9.99999974E-6 : f32
      %192 = vector.broadcast %cst_92 : f32 to vector<8x1xf32>
      %193 = arith.addf %189, %192 : vector<8x1xf32>
      %194 = math.rsqrt %193 : vector<8x1xf32>
      %195 = vector.broadcast %194 : vector<8x1xf32> to vector<8x32xf32>
      %196 = arith.mulf %191, %195 : vector<8x32xf32>
      %197 = vector.broadcast %177 : vector<1x32xf32> to vector<8x32xf32>
      %198 = arith.mulf %196, %197 : vector<8x32xf32>
      %199 = vector.broadcast %178 : vector<1x32xf32> to vector<8x32xf32>
      %200 = arith.addf %198, %199 : vector<8x32xf32>
      %c0_93 = arith.constant 0 : index
      %c0_94 = arith.constant 0 : index
      %201 = vector.load %arg20[%c0_93, %c0_94] : memref<8x32xf32, #tpu.memory_space<vmem>>, vector<8x32xf32>
      tpu.vector_store %arg20[%c0_93, %c0_94], %200 {strides = array<i32>} : memref<8x32xf32, #tpu.memory_space<vmem>>, vector<8x32xf32>,
    } else {
    }
    %c0 = arith.constant 0 : index
    %c0_1 = arith.constant 0 : index
    %3 = vector.load %arg20[%c0, %c0_1] : memref<8x32xf32, #tpu.memory_space<vmem>>, vector<8x32xf32>
    %c0_2 = arith.constant 0 : index
    %c0_3 = arith.constant 0 : index
    %c0_4 = arith.constant 0 : index
    %4 = vector.load %arg7[%c0_2, %c0_3, %c0_4] : memref<1x32x96xf32, #tpu.memory_space<vmem>>, vector<1x32x96xf32>
    %5 = vector.shape_cast %4 : vector<1x32x96xf32> to vector<32x96xf32>
    %cst = arith.constant dense<0.000000e+00> : vector<8x96xf32>
    %6 = tpu.matmul %3, %5, %cst {dimension_numbers = #tpu.dot_dimension_numbers<[1], [0], [0], [1], [0, 0, 1, 1], [], []>} : vector<8x32xf32>, vector<32x96xf32>, vector<8x96xf32> -> vector<8x96xf32>
    %c0_5 = arith.constant 0 : index
    %c0_6 = arith.constant 0 : index
    %c0_7 = arith.constant 0 : index
    %7 = vector.load %arg8[%c0_5, %c0_6, %c0_7] : memref<1x1x96xf32, #tpu.memory_space<vmem>>, vector<1x1x96xf32>
    %8 = vector.shape_cast %7 : vector<1x1x96xf32> to vector<1x96xf32>
    %9 = vector.broadcast %8 : vector<1x96xf32> to vector<8x96xf32>
    %10 = arith.addf %6, %9 : vector<8x96xf32>
    %11 = vector.extract_strided_slice %10 {offsets = [0, 0], sizes = [8, 32], strides = [1, 1]} : vector<8x96xf32> to vector<8x32xf32>
    %12 = vector.extract_strided_slice %10 {offsets = [0, 32], sizes = [8, 32], strides = [1, 1]} : vector<8x96xf32> to vector<8x32xf32>
    %13 = vector.extract_strided_slice %10 {offsets = [0, 64], sizes = [8, 32], strides = [1, 1]} : vector<8x96xf32> to vector<8x32xf32>
    %14 = vector.extract_strided_slice %11 {offsets = [0, 0], sizes = [8, 8], strides = [1, 1]} : vector<8x32xf32> to vector<8x8xf32>
    %15 = vector.extract_strided_slice %12 {offsets = [0, 0], sizes = [8, 8], strides = [1, 1]} : vector<8x32xf32> to vector<8x8xf32>
    %16 = vector.extract_strided_slice %13 {offsets = [0, 0], sizes = [8, 8], strides = [1, 1]} : vector<8x32xf32> to vector<8x8xf32>
    %17 = tpu.transpose %15, [1, 0] : vector<8x8xf32> -> vector<8x8xf32>
    %cst_8 = arith.constant dense<0.000000e+00> : vector<8x8xf32>
    %18 = tpu.matmul %14, %17, %cst_8 {dimension_numbers = #tpu.dot_dimension_numbers<[1], [0], [0], [1], [0, 0, 1, 1], [], []>} : vector<8x8xf32>, vector<8x8xf32>, vector<8x8xf32> -> vector<8x8xf32>
    %cst_9 = arith.constant 0.353553385 : f32
    %19 = vector.broadcast %cst_9 : f32 to vector<8x8xf32>
    %20 = arith.mulf %18, %19 : vector<8x8xf32>
    %cst_10 = arith.constant dense<0xFF800000> : vector<8xf32>
    %21 = vector.multi_reduction <maximumf>, %20, %cst_10 [1] : vector<8x8xf32> to vector<8xf32>
    %22 = vector.shape_cast %21 : vector<8xf32> to vector<8x1xf32>
    %23 = vector.broadcast %22 : vector<8x1xf32> to vector<8x8xf32>
    %24 = arith.subf %20, %23 : vector<8x8xf32>
    %25 = math.exp %24 : vector<8x8xf32>
    %cst_11 = arith.constant dense<0.000000e+00> : vector<8xf32>
    %26 = vector.multi_reduction <add>, %25, %cst_11 [1] : vector<8x8xf32> to vector<8xf32>
    %27 = vector.shape_cast %26 : vector<8xf32> to vector<8x1xf32>
    %28 = tpu.reciprocal %27 {approx = true} : vector<8x1xf32> -> vector<8x1xf32>
    %29 = vector.broadcast %28 : vector<8x1xf32> to vector<8x8xf32>
    %30 = arith.mulf %25, %29 : vector<8x8xf32>
    %cst_12 = arith.constant dense<0.000000e+00> : vector<8x8xf32>
    %31 = tpu.matmul %30, %16, %cst_12 {dimension_numbers = #tpu.dot_dimension_numbers<[1], [0], [0], [1], [0, 0, 1, 1], [], []>} : vector<8x8xf32>, vector<8x8xf32>, vector<8x8xf32> -> vector<8x8xf32>
    %32 = vector.extract_strided_slice %11 {offsets = [0, 8], sizes = [8, 8], strides = [1, 1]} : vector<8x32xf32> to vector<8x8xf32>
    %33 = vector.extract_strided_slice %12 {offsets = [0, 8], sizes = [8, 8], strides = [1, 1]} : vector<8x32xf32> to vector<8x8xf32>
    %34 = vector.extract_strided_slice %13 {offsets = [0, 8], sizes = [8, 8], strides = [1, 1]} : vector<8x32xf32> to vector<8x8xf32>
    %35 = tpu.transpose %33, [1, 0] : vector<8x8xf32> -> vector<8x8xf32>
    %cst_13 = arith.constant dense<0.000000e+00> : vector<8x8xf32>
    %36 = tpu.matmul %32, %35, %cst_13 {dimension_numbers = #tpu.dot_dimension_numbers<[1], [0], [0], [1], [0, 0, 1, 1], [], []>} : vector<8x8xf32>, vector<8x8xf32>, vector<8x8xf32> -> vector<8x8xf32>
    %cst_14 = arith.constant 0.353553385 : f32
    %37 = vector.broadcast %cst_14 : f32 to vector<8x8xf32>
    %38 = arith.mulf %36, %37 : vector<8x8xf32>
    %cst_15 = arith.constant dense<0xFF800000> : vector<8xf32>
    %39 = vector.multi_reduction <maximumf>, %38, %cst_15 [1] : vector<8x8xf32> to vector<8xf32>
    %40 = vector.shape_cast %39 : vector<8xf32> to vector<8x1xf32>
    %41 = vector.broadcast %40 : vector<8x1xf32> to vector<8x8xf32>
    %42 = arith.subf %38, %41 : vector<8x8xf32>
    %43 = math.exp %42 : vector<8x8xf32>
    %cst_16 = arith.constant dense<0.000000e+00> : vector<8xf32>
    %44 = vector.multi_reduction <add>, %43, %cst_16 [1] : vector<8x8xf32> to vector<8xf32>
    %45 = vector.shape_cast %44 : vector<8xf32> to vector<8x1xf32>
    %46 = tpu.reciprocal %45 {approx = true} : vector<8x1xf32> -> vector<8x1xf32>
    %47 = vector.broadcast %46 : vector<8x1xf32> to vector<8x8xf32>
    %48 = arith.mulf %43, %47 : vector<8x8xf32>
    %cst_17 = arith.constant dense<0.000000e+00> : vector<8x8xf32>
    %49 = tpu.matmul %48, %34, %cst_17 {dimension_numbers = #tpu.dot_dimension_numbers<[1], [0], [0], [1], [0, 0, 1, 1], [], []>} : vector<8x8xf32>, vector<8x8xf32>, vector<8x8xf32> -> vector<8x8xf32>
    %50 = vector.extract_strided_slice %11 {offsets = [0, 16], sizes = [8, 8], strides = [1, 1]} : vector<8x32xf32> to vector<8x8xf32>
    %51 = vector.extract_strided_slice %12 {offsets = [0, 16], sizes = [8, 8], strides = [1, 1]} : vector<8x32xf32> to vector<8x8xf32>
    %52 = vector.extract_strided_slice %13 {offsets = [0, 16], sizes = [8, 8], strides = [1, 1]} : vector<8x32xf32> to vector<8x8xf32>
    %53 = tpu.transpose %51, [1, 0] : vector<8x8xf32> -> vector<8x8xf32>
    %cst_18 = arith.constant dense<0.000000e+00> : vector<8x8xf32>
    %54 = tpu.matmul %50, %53, %cst_18 {dimension_numbers = #tpu.dot_dimension_numbers<[1], [0], [0], [1], [0, 0, 1, 1], [], []>} : vector<8x8xf32>, vector<8x8xf32>, vector<8x8xf32> -> vector<8x8xf32>
    %cst_19 = arith.constant 0.353553385 : f32
    %55 = vector.broadcast %cst_19 : f32 to vector<8x8xf32>
    %56 = arith.mulf %54, %55 : vector<8x8xf32>
    %cst_20 = arith.constant dense<0xFF800000> : vector<8xf32>
    %57 = vector.multi_reduction <maximumf>, %56, %cst_20 [1] : vector<8x8xf32> to vector<8xf32>
    %58 = vector.shape_cast %57 : vector<8xf32> to vector<8x1xf32>
    %59 = vector.broadcast %58 : vector<8x1xf32> to vector<8x8xf32>
    %60 = arith.subf %56, %59 : vector<8x8xf32>
    %61 = math.exp %60 : vector<8x8xf32>
    %cst_21 = arith.constant dense<0.000000e+00> : vector<8xf32>
    %62 = vector.multi_reduction <add>, %61, %cst_21 [1] : vector<8x8xf32> to vector<8xf32>
    %63 = vector.shape_cast %62 : vector<8xf32> to vector<8x1xf32>
    %64 = tpu.reciprocal %63 {approx = true} : vector<8x1xf32> -> vector<8x1xf32>
    %65 = vector.broadcast %64 : vector<8x1xf32> to vector<8x8xf32>
    %66 = arith.mulf %61, %65 : vector<8x8xf32>
    %cst_22 = arith.constant dense<0.000000e+00> : vector<8x8xf32>
    %67 = tpu.matmul %66, %52, %cst_22 {dimension_numbers = #tpu.dot_dimension_numbers<[1], [0], [0], [1], [0, 0, 1, 1], [], []>} : vector<8x8xf32>, vector<8x8xf32>, vector<8x8xf32> -> vector<8x8xf32>
    %68 = vector.extract_strided_slice %11 {offsets = [0, 24], sizes = [8, 8], strides = [1, 1]} : vector<8x32xf32> to vector<8x8xf32>
    %69 = vector.extract_strided_slice %12 {offsets = [0, 24], sizes = [8, 8], strides = [1, 1]} : vector<8x32xf32> to vector<8x8xf32>
    %70 = vector.extract_strided_slice %13 {offsets = [0, 24], sizes = [8, 8], strides = [1, 1]} : vector<8x32xf32> to vector<8x8xf32>
    %71 = tpu.transpose %69, [1, 0] : vector<8x8xf32> -> vector<8x8xf32>
    %cst_23 = arith.constant dense<0.000000e+00> : vector<8x8xf32>
    %72 = tpu.matmul %68, %71, %cst_23 {dimension_numbers = #tpu.dot_dimension_numbers<[1], [0], [0], [1], [0, 0, 1, 1], [], []>} : vector<8x8xf32>, vector<8x8xf32>, vector<8x8xf32> -> vector<8x8xf32>
    %cst_24 = arith.constant 0.353553385 : f32
    %73 = vector.broadcast %cst_24 : f32 to vector<8x8xf32>
    %74 = arith.mulf %72, %73 : vector<8x8xf32>
    %cst_25 = arith.constant dense<0xFF800000> : vector<8xf32>
    %75 = vector.multi_reduction <maximumf>, %74, %cst_25 [1] : vector<8x8xf32> to vector<8xf32>
    %76 = vector.shape_cast %75 : vector<8xf32> to vector<8x1xf32>
    %77 = vector.broadcast %76 : vector<8x1xf32> to vector<8x8xf32>
    %78 = arith.subf %74, %77 : vector<8x8xf32>
    %79 = math.exp %78 : vector<8x8xf32>
    %cst_26 = arith.constant dense<0.000000e+00> : vector<8xf32>
    %80 = vector.multi_reduction <add>, %79, %cst_26 [1] : vector<8x8xf32> to vector<8xf32>
    %81 = vector.shape_cast %80 : vector<8xf32> to vector<8x1xf32>
    %82 = tpu.reciprocal %81 {approx = true} : vector<8x1xf32> -> vector<8x1xf32>
    %83 = vector.broadcast %82 : vector<8x1xf32> to vector<8x8xf32>
    %84 = arith.mulf %79, %83 : vector<8x8xf32>
    %cst_27 = arith.constant dense<0.000000e+00> : vector<8x8xf32>
    %85 = tpu.matmul %84, %70, %cst_27 {dimension_numbers = #tpu.dot_dimension_numbers<[1], [0], [0], [1], [0, 0, 1, 1], [], []>} : vector<8x8xf32>, vector<8x8xf32>, vector<8x8xf32> -> vector<8x8xf32>
    %86 = tpu.concatenate %31, %49, %67, %85 in 1 : vector<8x8xf32>, vector<8x8xf32>, vector<8x8xf32>, vector<8x8xf32> -> vector<8x32xf32>
    %c0_28 = arith.constant 0 : index
    %c0_29 = arith.constant 0 : index
    %c0_30 = arith.constant 0 : index
    %87 = vector.load %arg9[%c0_28, %c0_29, %c0_30] : memref<1x32x32xf32, #tpu.memory_space<vmem>>, vector<1x32x32xf32>
    %88 = vector.shape_cast %87 : vector<1x32x32xf32> to vector<32x32xf32>
    %cst_31 = arith.constant dense<0.000000e+00> : vector<8x32xf32>
    %89 = tpu.matmul %86, %88, %cst_31 {dimension_numbers = #tpu.dot_dimension_numbers<[1], [0], [0], [1], [0, 0, 1, 1], [], []>} : vector<8x32xf32>, vector<32x32xf32>, vector<8x32xf32> -> vector<8x32xf32>
    %c0_32 = arith.constant 0 : index
    %c0_33 = arith.constant 0 : index
    %c0_34 = arith.constant 0 : index
    %90 = vector.load %arg10[%c0_32, %c0_33, %c0_34] : memref<1x1x32xf32, #tpu.memory_space<vmem>>, vector<1x1x32xf32>
    %91 = vector.shape_cast %90 : vector<1x1x32xf32> to vector<1x32xf32>
    %92 = vector.broadcast %91 : vector<1x32xf32> to vector<8x32xf32>
    %93 = arith.addf %89, %92 : vector<8x32xf32>
    %94 = arith.addf %3, %93 : vector<8x32xf32>
    %c0_35 = arith.constant 0 : index
    %c0_36 = arith.constant 0 : index
    %c0_37 = arith.constant 0 : index
    %95 = vector.load %arg11[%c0_35, %c0_36, %c0_37] : memref<1x1x32xf32, #tpu.memory_space<vmem>>, vector<1x1x32xf32>
    %96 = vector.shape_cast %95 : vector<1x1x32xf32> to vector<1x32xf32>
    %c0_38 = arith.constant 0 : index
    %c0_39 = arith.constant 0 : index
    %c0_40 = arith.constant 0 : index
    %97 = vector.load %arg12[%c0_38, %c0_39, %c0_40] : memref<1x1x32xf32, #tpu.memory_space<vmem>>, vector<1x1x32xf32>
    %98 = vector.shape_cast %97 : vector<1x1x32xf32> to vector<1x32xf32>
    %cst_41 = arith.constant dense<0.000000e+00> : vector<8xf32>
    %99 = vector.multi_reduction <add>, %94, %cst_41 [1] : vector<8x32xf32> to vector<8xf32>
    %100 = vector.shape_cast %99 : vector<8xf32> to vector<8x1xf32>
    %cst_42 = arith.constant 3.200000e+01 : f32
    %101 = vector.broadcast %cst_42 : f32 to vector<8x1xf32>
    %102 = arith.divf %100, %101 : vector<8x1xf32>
    %103 = vector.broadcast %102 : vector<8x1xf32> to vector<8x32xf32>
    %104 = arith.subf %94, %103 : vector<8x32xf32>
    %105 = arith.mulf %104, %104 : vector<8x32xf32>
    %cst_43 = arith.constant dense<0.000000e+00> : vector<8xf32>
    %106 = vector.multi_reduction <add>, %105, %cst_43 [1] : vector<8x32xf32> to vector<8xf32>
    %107 = vector.shape_cast %106 : vector<8xf32> to vector<8x1xf32>
    %cst_44 = arith.constant 3.200000e+01 : f32
    %108 = vector.broadcast %cst_44 : f32 to vector<8x1xf32>
    %109 = arith.divf %107, %108 : vector<8x1xf32>
    %110 = vector.broadcast %102 : vector<8x1xf32> to vector<8x32xf32>
    %111 = arith.subf %94, %110 : vector<8x32xf32>
    %cst_45 = arith.constant 9.99999974E-6 : f32
    %112 = vector.broadcast %cst_45 : f32 to vector<8x1xf32>
    %113 = arith.addf %109, %112 : vector<8x1xf32>
    %114 = math.rsqrt %113 : vector<8x1xf32>
    %115 = vector.broadcast %114 : vector<8x1xf32> to vector<8x32xf32>
    %116 = arith.mulf %111, %115 : vector<8x32xf32>
    %117 = vector.broadcast %96 : vector<1x32xf32> to vector<8x32xf32>
    %118 = arith.mulf %116, %117 : vector<8x32xf32>
    %119 = vector.broadcast %98 : vector<1x32xf32> to vector<8x32xf32>
    %120 = arith.addf %118, %119 : vector<8x32xf32>
    %c0_46 = arith.constant 0 : index
    %c0_47 = arith.constant 0 : index
    %c0_48 = arith.constant 0 : index
    %121 = vector.load %arg13[%c0_46, %c0_47, %c0_48] : memref<1x32x64xf32, #tpu.memory_space<vmem>>, vector<1x32x64xf32>
    %122 = vector.shape_cast %121 : vector<1x32x64xf32> to vector<32x64xf32>
    %cst_49 = arith.constant dense<0.000000e+00> : vector<8x64xf32>
    %123 = tpu.matmul %120, %122, %cst_49 {dimension_numbers = #tpu.dot_dimension_numbers<[1], [0], [0], [1], [0, 0, 1, 1], [], []>} : vector<8x32xf32>, vector<32x64xf32>, vector<8x64xf32> -> vector<8x64xf32>
    %c0_50 = arith.constant 0 : index
    %c0_51 = arith.constant 0 : index
    %c0_52 = arith.constant 0 : index
    %124 = vector.load %arg14[%c0_50, %c0_51, %c0_52] : memref<1x1x64xf32, #tpu.memory_space<vmem>>, vector<1x1x64xf32>
    %125 = vector.shape_cast %124 : vector<1x1x64xf32> to vector<1x64xf32>
    %126 = vector.broadcast %125 : vector<1x64xf32> to vector<8x64xf32>
    %127 = arith.addf %123, %126 : vector<8x64xf32>
    %cst_53 = arith.constant 0.000000e+00 : f32
    %128 = vector.broadcast %cst_53 : f32 to vector<8x64xf32>
    %129 = arith.maximumf %127, %128 : vector<8x64xf32>
    %c0_54 = arith.constant 0 : index
    %c0_55 = arith.constant 0 : index
    %c0_56 = arith.constant 0 : index
    %130 = vector.load %arg15[%c0_54, %c0_55, %c0_56] : memref<1x64x32xf32, #tpu.memory_space<vmem>>, vector<1x64x32xf32>
    %131 = vector.shape_cast %130 : vector<1x64x32xf32> to vector<64x32xf32>
    %cst_57 = arith.constant dense<0.000000e+00> : vector<8x32xf32>
    %132 = tpu.matmul %129, %131, %cst_57 {dimension_numbers = #tpu.dot_dimension_numbers<[1], [0], [0], [1], [0, 0, 1, 1], [], []>} : vector<8x64xf32>, vector<64x32xf32>, vector<8x32xf32> -> vector<8x32xf32>
    %c0_58 = arith.constant 0 : index
    %c0_59 = arith.constant 0 : index
    %c0_60 = arith.constant 0 : index
    %133 = vector.load %arg16[%c0_58, %c0_59, %c0_60] : memref<1x1x32xf32, #tpu.memory_space<vmem>>, vector<1x1x32xf32>
    %134 = vector.shape_cast %133 : vector<1x1x32xf32> to vector<1x32xf32>
    %135 = vector.broadcast %134 : vector<1x32xf32> to vector<8x32xf32>
    %136 = arith.addf %132, %135 : vector<8x32xf32>
    %137 = arith.addf %120, %136 : vector<8x32xf32>
    %c0_61 = arith.constant 0 : index
    %c0_62 = arith.constant 0 : index
    %c0_63 = arith.constant 0 : index
    %138 = vector.load %arg17[%c0_61, %c0_62, %c0_63] : memref<1x1x32xf32, #tpu.memory_space<vmem>>, vector<1x1x32xf32>
    %139 = vector.shape_cast %138 : vector<1x1x32xf32> to vector<1x32xf32>
    %c0_64 = arith.constant 0 : index
    %c0_65 = arith.constant 0 : index
    %c0_66 = arith.constant 0 : index
    %140 = vector.load %arg18[%c0_64, %c0_65, %c0_66] : memref<1x1x32xf32, #tpu.memory_space<vmem>>, vector<1x1x32xf32>
    %141 = vector.shape_cast %140 : vector<1x1x32xf32> to vector<1x32xf32>
    %cst_67 = arith.constant dense<0.000000e+00> : vector<8xf32>
    %142 = vector.multi_reduction <add>, %137, %cst_67 [1] : vector<8x32xf32> to vector<8xf32>
    %143 = vector.shape_cast %142 : vector<8xf32> to vector<8x1xf32>
    %cst_68 = arith.constant 3.200000e+01 : f32
    %144 = vector.broadcast %cst_68 : f32 to vector<8x1xf32>
    %145 = arith.divf %143, %144 : vector<8x1xf32>
    %146 = vector.broadcast %145 : vector<8x1xf32> to vector<8x32xf32>
    %147 = arith.subf %137, %146 : vector<8x32xf32>
    %148 = arith.mulf %147, %147 : vector<8x32xf32>
    %cst_69 = arith.constant dense<0.000000e+00> : vector<8xf32>
    %149 = vector.multi_reduction <add>, %148, %cst_69 [1] : vector<8x32xf32> to vector<8xf32>
    %150 = vector.shape_cast %149 : vector<8xf32> to vector<8x1xf32>
    %cst_70 = arith.constant 3.200000e+01 : f32
    %151 = vector.broadcast %cst_70 : f32 to vector<8x1xf32>
    %152 = arith.divf %150, %151 : vector<8x1xf32>
    %153 = vector.broadcast %145 : vector<8x1xf32> to vector<8x32xf32>
    %154 = arith.subf %137, %153 : vector<8x32xf32>
    %cst_71 = arith.constant 9.99999974E-6 : f32
    %155 = vector.broadcast %cst_71 : f32 to vector<8x1xf32>
    %156 = arith.addf %152, %155 : vector<8x1xf32>
    %157 = math.rsqrt %156 : vector<8x1xf32>
    %158 = vector.broadcast %157 : vector<8x1xf32> to vector<8x32xf32>
    %159 = arith.mulf %154, %158 : vector<8x32xf32>
    %160 = vector.broadcast %139 : vector<1x32xf32> to vector<8x32xf32>
    %161 = arith.mulf %159, %160 : vector<8x32xf32>
    %162 = vector.broadcast %141 : vector<1x32xf32> to vector<8x32xf32>
    %163 = arith.addf %161, %162 : vector<8x32xf32>
    %c0_72 = arith.constant 0 : index
    %c0_73 = arith.constant 0 : index
    %164 = vector.load %arg20[%c0_72, %c0_73] : memref<8x32xf32, #tpu.memory_space<vmem>>, vector<8x32xf32>
    tpu.vector_store %arg20[%c0_72, %c0_73], %163 {strides = array<i32>} : memref<8x32xf32, #tpu.memory_space<vmem>>, vector<8x32xf32>,
    %c1_i32 = arith.constant 1 : i32
    %165 = arith.cmpi eq, %arg1, %c1_i32 : i32
    %166 = arith.extui %165 : i1 to i32
    %c0_i32_74 = arith.constant 0 : i32
    %167 = arith.cmpi ne, %166, %c0_i32_74 : i32
    scf.if %167 {
      %c0_75 = arith.constant 0 : index
      %c0_76 = arith.constant 0 : index
      %c0_77 = arith.constant 0 : index
      %168 = vector.load %arg19[%c0_75, %c0_76, %c0_77] : memref<1x8x32xf32, #tpu.memory_space<vmem>>, vector<1x8x32xf32>
      %169 = vector.shape_cast %168 : vector<1x8x32xf32> to vector<8x32xf32>
      %170 = vector.shape_cast %163 : vector<8x32xf32> to vector<1x8x32xf32>
      tpu.vector_store %arg19[%c0_75, %c0_76, %c0_77], %170 {strides = array<i32>} : memref<1x8x32xf32, #tpu.memory_space<vmem>>, vector<1x8x32xf32>,
    } else {
    }
    return
  }
  func.func @transform_0(%arg0: i32, %arg1: i32) -> (i32, i32, i32) {
    %c0_i32 = arith.constant 0 : i32
    %c0_i32_0 = arith.constant 0 : i32
    %c0_i32_1 = arith.constant 0 : i32
    return %arg0, %c0_i32, %c0_i32_0 : i32, i32, i32
  }
  func.func @transform_1(%arg0: i32, %arg1: i32) -> (i32, i32) {
    %c0_i32 = arith.constant 0 : i32
    %c0_i32_0 = arith.constant 0 : i32
    %c0_i32_1 = arith.constant 0 : i32
    return %c0_i32, %c0_i32_0 : i32, i32
  }
  func.func @transform_2(%arg0: i32, %arg1: i32) -> (i32, i32) {
    %c0_i32 = arith.constant 0 : i32
    %c0_i32_0 = arith.constant 0 : i32
    %c0_i32_1 = arith.constant 0 : i32
    return %c0_i32, %c0_i32_0 : i32, i32
  }
  func.func @transform_3(%arg0: i32, %arg1: i32) -> (i32, i32) {
    %c0_i32 = arith.constant 0 : i32
    %c0_i32_0 = arith.constant 0 : i32
    %c0_i32_1 = arith.constant 0 : i32
    return %c0_i32, %c0_i32_0 : i32, i32
  }
  func.func @transform_4(%arg0: i32, %arg1: i32) -> (i32, i32) {
    %c0_i32 = arith.constant 0 : i32
    %c0_i32_0 = arith.constant 0 : i32
    %c0_i32_1 = arith.constant 0 : i32
    return %c0_i32, %c0_i32_0 : i32, i32
  }
  func.func @transform_5(%arg0: i32, %arg1: i32) -> (i32, i32, i32) {
    %c0_i32 = arith.constant 0 : i32
    %c0_i32_0 = arith.constant 0 : i32
    %c0_i32_1 = arith.constant 0 : i32
    return %arg1, %c0_i32, %c0_i32_0 : i32, i32, i32
  }
  func.func @transform_6(%arg0: i32, %arg1: i32) -> (i32, i32, i32) {
    %c0_i32 = arith.constant 0 : i32
    %c0_i32_0 = arith.constant 0 : i32
    %c0_i32_1 = arith.constant 0 : i32
    return %arg1, %c0_i32, %c0_i32_0 : i32, i32, i32
  }
  func.func @transform_7(%arg0: i32, %arg1: i32) -> (i32, i32, i32) {
    %c0_i32 = arith.constant 0 : i32
    %c0_i32_0 = arith.constant 0 : i32
    %c0_i32_1 = arith.constant 0 : i32
    return %arg1, %c0_i32, %c0_i32_0 : i32, i32, i32
  }
  func.func @transform_8(%arg0: i32, %arg1: i32) -> (i32, i32, i32) {
    %c0_i32 = arith.constant 0 : i32
    %c0_i32_0 = arith.constant 0 : i32
    %c0_i32_1 = arith.constant 0 : i32
    return %arg1, %c0_i32, %c0_i32_0 : i32, i32, i32
  }
  func.func @transform_9(%arg0: i32, %arg1: i32) -> (i32, i32, i32) {
    %c0_i32 = arith.constant 0 : i32
    %c0_i32_0 = arith.constant 0 : i32
    %c0_i32_1 = arith.constant 0 : i32
    return %arg1, %c0_i32, %c0_i32_0 : i32, i32, i32
  }
  func.func @transform_10(%arg0: i32, %arg1: i32) -> (i32, i32, i32) {
    %c0_i32 = arith.constant 0 : i32
    %c0_i32_0 = arith.constant 0 : i32
    %c0_i32_1 = arith.constant 0 : i32
    return %arg1, %c0_i32, %c0_i32_0 : i32, i32, i32
  }
  func.func @transform_11(%arg0: i32, %arg1: i32) -> (i32, i32, i32) {
    %c0_i32 = arith.constant 0 : i32
    %c0_i32_0 = arith.constant 0 : i32
    %c0_i32_1 = arith.constant 0 : i32
    return %arg1, %c0_i32, %c0_i32_0 : i32, i32, i32
  }
  func.func @transform_12(%arg0: i32, %arg1: i32) -> (i32, i32, i32) {
    %c0_i32 = arith.constant 0 : i32
    %c0_i32_0 = arith.constant 0 : i32
    %c0_i32_1 = arith.constant 0 : i32
    return %arg1, %c0_i32, %c0_i32_0 : i32, i32, i32
  }
  func.func @transform_13(%arg0: i32, %arg1: i32) -> (i32, i32, i32) {
    %c0_i32 = arith.constant 0 : i32
    %c0_i32_0 = arith.constant 0 : i32
    %c0_i32_1 = arith.constant 0 : i32
    return %arg1, %c0_i32, %c0_i32_0 : i32, i32, i32
  }
  func.func @transform_14(%arg0: i32, %arg1: i32) -> (i32, i32, i32) {
    %c0_i32 = arith.constant 0 : i32
    %c0_i32_0 = arith.constant 0 : i32
    %c0_i32_1 = arith.constant 0 : i32
    return %arg1, %c0_i32, %c0_i32_0 : i32, i32, i32
  }
  func.func @transform_15(%arg0: i32, %arg1: i32) -> (i32, i32, i32) {
    %c0_i32 = arith.constant 0 : i32
    %c0_i32_0 = arith.constant 0 : i32
    %c0_i32_1 = arith.constant 0 : i32
    return %arg1, %c0_i32, %c0_i32_0 : i32, i32, i32
  }
  func.func @transform_16(%arg0: i32, %arg1: i32) -> (i32, i32, i32) {
    %c0_i32 = arith.constant 0 : i32
    %c0_i32_0 = arith.constant 0 : i32
    %c0_i32_1 = arith.constant 0 : i32
    return %arg1, %c0_i32, %c0_i32_0 : i32, i32, i32
  }
  func.func @transform_17(%arg0: i32, %arg1: i32) -> (i32, i32, i32) {
    %c0_i32 = arith.constant 0 : i32
    %c0_i32_0 = arith.constant 0 : i32
    %c0_i32_1 = arith.constant 0 : i32
    return %arg0, %c0_i32, %c0_i32_0 : i32, i32, i32
  }
}

</mosaic_0001>

<llo_original>
// kernel: tpu_custom_call.1
$region0: #{tpu_custom_call.1}
  #allocation0 [shape = 'u32[]', space=smem, size = 0x4, offset = 0x4, fixed_abs, tag = 'smem constant byte address 0x4 - core index']
  #allocation1 [shape = 'u32[144,128]{1,0:T(1,128)}', space=vmem, size = 0x12000, scoped, tag = 'internal scratch']
  #allocation2 [shape = 'f32[8,32]{1,0:T(8,128)}', space=vmem, size = 0x1000, scoped, tag = 'scratch operand']
  %s0 = inlined_call_operand.vmem [shape: f32[2,8,64], index: 0, kind: input, shape index: {}]
  %s1 = inlined_call_operand.vmem [shape: f32[64,32], index: 1, kind: input, shape index: {}]
  %s2 = inlined_call_operand.vmem [shape: f32[1,32], index: 2, kind: input, shape index: {}]
  %s3 = inlined_call_operand.vmem [shape: f32[1,32], index: 3, kind: input, shape index: {}]
  %s4 = inlined_call_operand.vmem [shape: f32[1,32], index: 4, kind: input, shape index: {}]
  %s5 = inlined_call_operand.vmem [shape: f32[2,32,96], index: 5, kind: input, shape index: {}]
  %s6 = inlined_call_operand.vmem [shape: f32[2,1,96], index: 6, kind: input, shape index: {}]
  %s7 = inlined_call_operand.vmem [shape: f32[2,32,32], index: 7, kind: input, shape index: {}]
  %s8 = inlined_call_operand.vmem [shape: f32[2,1,32], index: 8, kind: input, shape index: {}]
  %s9 = inlined_call_operand.vmem [shape: f32[2,1,32], index: 9, kind: input, shape index: {}]
  %s10 = inlined_call_operand.vmem [shape: f32[2,1,32], index: 10, kind: input, shape index: {}]
  %s11 = inlined_call_operand.vmem [shape: f32[2,32,64], index: 11, kind: input, shape index: {}]
  %s12 = inlined_call_operand.vmem [shape: f32[2,1,64], index: 12, kind: input, shape index: {}]
  %s13 = inlined_call_operand.vmem [shape: f32[2,64,32], index: 13, kind: input, shape index: {}]
  %s14 = inlined_call_operand.vmem [shape: f32[2,1,32], index: 14, kind: input, shape index: {}]
  %s15 = inlined_call_operand.vmem [shape: f32[2,1,32], index: 15, kind: input, shape index: {}]
  %s16 = inlined_call_operand.vmem [shape: f32[2,1,32], index: 16, kind: input, shape index: {}]
  %s17 = inlined_call_operand.hbm [shape: f32[2,8,32], index: 17, kind: output, shape index: {}]
  %s18 = sld [smem:[#allocation0]]
  $region109: #{tpu_custom_call.1} parent=0
    _
  %s20 = ssub.s32 1, %s18
  %s21 = scalar_select 0, %s20, %s18
  $region1: #{tpu_custom_call.1} parent=0
    #allocation3 [shape = 'u8[8192]{0}', space=vmem, size = 0x2000, scoped, tag = 'output window, operand 0']
    #allocation4 [shape = 's32[2]{0}', space=sflag, size = 0x8, scoped, tag = 'scoped memory for tpu_custom_call.1']
    %22 = vsyncpa [#allocation4], 0
    %s23 = scalar_lea.sflag [#allocation4], 1
    %24 = vsyncpa %s23, 0
    loop: start=0, step=1, limit=6
    $region2: #{tpu_custom_call.1} parent=1 // loop_pre_header
      _
    $region3: #{tpu_custom_call.1} parent=1 // loop_header
      %s26 = sphi 0, %s30
      %p27 = scmp.ge.s32.totalorder %s26, 6
      %s33 = sphi 0, %s45
      %s34 = sphi 0, %s41
      %s35 = sphi 0, %s33
      %s36 = sphi 0, %s34
      %s37 = sphi 0, %s35
      %s38 = sphi 0, %s36
      %s48 = sphi 0, %s50
      %s51 = sphi 0, %s48
      %s52 = sphi 0, %s51
      %s68 = sphi 0, %s52
      %s72 = sphi 0, %s72
      %s74 = sphi 0, %s72
      %s75 = sphi 0, %s74
      %s89 = sphi 0, %s75
      %s93 = sphi 0, %s93
      %s95 = sphi 0, %s93
      %s96 = sphi 0, %s95
      %s110 = sphi 0, %s96
      %s114 = sphi 0, %s114
      %s116 = sphi 0, %s114
      %s117 = sphi 0, %s116
      %s131 = sphi 0, %s117
      %s135 = sphi 0, %s135
      %s137 = sphi 0, %s135
      %s138 = sphi 0, %s137
      %s152 = sphi 0, %s138
      %s158 = sphi 0, %s160
      %s161 = sphi 0, %s158
      %s162 = sphi 0, %s161
      %s178 = sphi 0, %s162
      %s184 = sphi 0, %s186
      %s187 = sphi 0, %s184
      %s188 = sphi 0, %s187
      %s204 = sphi 0, %s188
      %s210 = sphi 0, %s212
      %s213 = sphi 0, %s210
      %s214 = sphi 0, %s213
      %s230 = sphi 0, %s214
      %s236 = sphi 0, %s238
      %s239 = sphi 0, %s236
      %s240 = sphi 0, %s239
      %s256 = sphi 0, %s240
      %s262 = sphi 0, %s264
      %s265 = sphi 0, %s262
      %s266 = sphi 0, %s265
      %s282 = sphi 0, %s266
      %s288 = sphi 0, %s290
      %s291 = sphi 0, %s288
      %s292 = sphi 0, %s291
      %s308 = sphi 0, %s292
      %s314 = sphi 0, %s316
      %s317 = sphi 0, %s314
      %s318 = sphi 0, %s317
      %s334 = sphi 0, %s318
      %s340 = sphi 0, %s342
      %s343 = sphi 0, %s340
      %s344 = sphi 0, %s343
      %s360 = sphi 0, %s344
      %s366 = sphi 0, %s368
      %s369 = sphi 0, %s366
      %s370 = sphi 0, %s369
      %s386 = sphi 0, %s370
      %s392 = sphi 0, %s394
      %s395 = sphi 0, %s392
      %s396 = sphi 0, %s395
      %s412 = sphi 0, %s396
      %s418 = sphi 0, %s420
      %s421 = sphi 0, %s418
      %s422 = sphi 0, %s421
      %s438 = sphi 0, %s422
      %s444 = sphi 0, %s446
      %s447 = sphi 0, %s444
      %s448 = sphi 0, %s447
      %s464 = sphi 0, %s448
      %s470 = sphi 0, %s472
      %s473 = sphi 0, %s470
      %s474 = sphi 0, %s473
      %s490 = sphi 0, %s474
    $region4: #{tpu_custom_call.1} parent=1 // loop_header_branch
      %29 = sbr.rel (%p27) target = $region8
    $region5: #{tpu_custom_call.1} parent=1 // loop_body
      %s31 = ssub.s32 %s26, 1
      %s32 = ssub.s32 %s26, 2
      %s39 = sadd.s32 1, %s34
      %p40 = scmp.ge.s32.totalorder %s39, 2
      %s41 = scalar_select %p40, 0, %s39
      %s42 = sadd.s32 1, %s33
      %s43 = scalar_select %p40, %s42, %s33
      %p44 = scmp.ge.s32.totalorder %s43, 2
      %s45 = scalar_select %p44, 0, %s43
      %s46 = ssub.s32 %s33, %s45
      %p47 = scmp.eq.s32.totalorder %s46, 0
      %s49 = sadd.s32 %s48, 1
      %s50 = scalar_select %p47, %s48, %s49
      %p53 = pneg %p47
      %p54 = scmp.eq.s32.totalorder %s26, 3
      %p55 = por %p53, %p54
      %p56 = scmp.ne.s32.totalorder %s48, %s51
      %p57 = scmp.eq.s32.totalorder %s26, 0
      %p58 = por %p56, %p57
      %p59 = scmp.ne.s32.totalorder %s48, %s51
      %p60 = scmp.eq.s32.totalorder %s31, 3
      %p61 = por %p59, %p60
      %p62 = scmp.ne.s32.totalorder %s51, %s52
      %p63 = scmp.eq.s32.totalorder %s31, 0
      %p64 = por %p62, %p63
      %p65 = scmp.ne.s32.totalorder %s51, %s52
      %p66 = scmp.eq.s32.totalorder %s32, 3
      %p67 = por %p65, %p66
      %p69 = scmp.ne.s32.totalorder %s52, %s68
      %p70 = scmp.eq.s32.totalorder %s32, 0
      %p71 = por %p69, %p70
      %s73 = sadd.s32 %s72, 1
      %p76 = scmp.eq.s32.totalorder %s26, 3
      %p77 = scmp.ne.s32.totalorder %s72, %s74
      %p78 = scmp.eq.s32.totalorder %s26, 0
      %p79 = por %p77, %p78
      %p80 = scmp.ne.s32.totalorder %s72, %s74
      %p81 = scmp.eq.s32.totalorder %s31, 3
      %p82 = por %p80, %p81
      %p83 = scmp.ne.s32.totalorder %s74, %s75
      %p84 = scmp.eq.s32.totalorder %s31, 0
      %p85 = por %p83, %p84
      %p86 = scmp.ne.s32.totalorder %s74, %s75
      %p87 = scmp.eq.s32.totalorder %s32, 3
      %p88 = por %p86, %p87
      %p90 = scmp.ne.s32.totalorder %s75, %s89
      %p91 = scmp.eq.s32.totalorder %s32, 0
      %p92 = por %p90, %p91
      %s94 = sadd.s32 %s93, 1
      %p97 = scmp.eq.s32.totalorder %s26, 3
      %p98 = scmp.ne.s32.totalorder %s93, %s95
      %p99 = scmp.eq.s32.totalorder %s26, 0
      %p100 = por %p98, %p99
      %p101 = scmp.ne.s32.totalorder %s93, %s95
      %p102 = scmp.eq.s32.totalorder %s31, 3
      %p103 = por %p101, %p102
      %p104 = scmp.ne.s32.totalorder %s95, %s96
      %p105 = scmp.eq.s32.totalorder %s31, 0
      %p106 = por %p104, %p105
      %p107 = scmp.ne.s32.totalorder %s95, %s96
      %p108 = scmp.eq.s32.totalorder %s32, 3
      %p109 = por %p107, %p108
      %p111 = scmp.ne.s32.totalorder %s96, %s110
      %p112 = scmp.eq.s32.totalorder %s32, 0
      %p113 = por %p111, %p112
      %s115 = sadd.s32 %s114, 1
      %p118 = scmp.eq.s32.totalorder %s26, 3
      %p119 = scmp.ne.s32.totalorder %s114, %s116
      %p120 = scmp.eq.s32.totalorder %s26, 0
      %p121 = por %p119, %p120
      %p122 = scmp.ne.s32.totalorder %s114, %s116
      %p123 = scmp.eq.s32.totalorder %s31, 3
      %p124 = por %p122, %p123
      %p125 = scmp.ne.s32.totalorder %s116, %s117
      %p126 = scmp.eq.s32.totalorder %s31, 0
      %p127 = por %p125, %p126
      %p128 = scmp.ne.s32.totalorder %s116, %s117
      %p129 = scmp.eq.s32.totalorder %s32, 3
      %p130 = por %p128, %p129
      %p132 = scmp.ne.s32.totalorder %s117, %s131
      %p133 = scmp.eq.s32.totalorder %s32, 0
      %p134 = por %p132, %p133
      %s136 = sadd.s32 %s135, 1
      %p139 = scmp.eq.s32.totalorder %s26, 3
      %p140 = scmp.ne.s32.totalorder %s135, %s137
      %p141 = scmp.eq.s32.totalorder %s26, 0
      %p142 = por %p140, %p141
      %p143 = scmp.ne.s32.totalorder %s135, %s137
      %p144 = scmp.eq.s32.totalorder %s31, 3
      %p145 = por %p143, %p144
      %p146 = scmp.ne.s32.totalorder %s137, %s138
      %p147 = scmp.eq.s32.totalorder %s31, 0
      %p148 = por %p146, %p147
      %p149 = scmp.ne.s32.totalorder %s137, %s138
      %p150 = scmp.eq.s32.totalorder %s32, 3
      %p151 = por %p149, %p150
      %p153 = scmp.ne.s32.totalorder %s138, %s152
      %p154 = scmp.eq.s32.totalorder %s32, 0
      %p155 = por %p153, %p154
      %s156 = ssub.s32 %s34, %s41
      %p157 = scmp.eq.s32.totalorder %s156, 0
      %s159 = sadd.s32 %s158, 1
      %s160 = scalar_select %p157, %s158, %s159
      %p163 = pneg %p157
      %p164 = scmp.eq.s32.totalorder %s26, 3
      %p165 = por %p163, %p164
      %p166 = scmp.ne.s32.totalorder %s158, %s161
      %p167 = scmp.eq.s32.totalorder %s26, 0
      %p168 = por %p166, %p167
      %p169 = scmp.ne.s32.totalorder %s158, %s161
      %p170 = scmp.eq.s32.totalorder %s31, 3
      %p171 = por %p169, %p170
      %p172 = scmp.ne.s32.totalorder %s161, %s162
      %p173 = scmp.eq.s32.totalorder %s31, 0
      %p174 = por %p172, %p173
      %p175 = scmp.ne.s32.totalorder %s161, %s162
      %p176 = scmp.eq.s32.totalorder %s32, 3
      %p177 = por %p175, %p176
      %p179 = scmp.ne.s32.totalorder %s162, %s178
      %p180 = scmp.eq.s32.totalorder %s32, 0
      %p181 = por %p179, %p180
      %s182 = ssub.s32 %s34, %s41
      %p183 = scmp.eq.s32.totalorder %s182, 0
      %s185 = sadd.s32 %s184, 1
      %s186 = scalar_select %p183, %s184, %s185
      %p189 = pneg %p183
      %p190 = scmp.eq.s32.totalorder %s26, 3
      %p191 = por %p189, %p190
      %p192 = scmp.ne.s32.totalorder %s184, %s187
      %p193 = scmp.eq.s32.totalorder %s26, 0
      %p194 = por %p192, %p193
      %p195 = scmp.ne.s32.totalorder %s184, %s187
      %p196 = scmp.eq.s32.totalorder %s31, 3
      %p197 = por %p195, %p196
      %p198 = scmp.ne.s32.totalorder %s187, %s188
      %p199 = scmp.eq.s32.totalorder %s31, 0
      %p200 = por %p198, %p199
      %p201 = scmp.ne.s32.totalorder %s187, %s188
      %p202 = scmp.eq.s32.totalorder %s32, 3
      %p203 = por %p201, %p202
      %p205 = scmp.ne.s32.totalorder %s188, %s204
      %p206 = scmp.eq.s32.totalorder %s32, 0
      %p207 = por %p205, %p206
      %s208 = ssub.s32 %s34, %s41
      %p209 = scmp.eq.s32.totalorder %s208, 0
      %s211 = sadd.s32 %s210, 1
      %s212 = scalar_select %p209, %s210, %s211
      %p215 = pneg %p209
      %p216 = scmp.eq.s32.totalorder %s26, 3
      %p217 = por %p215, %p216
      %p218 = scmp.ne.s32.totalorder %s210, %s213
      %p219 = scmp.eq.s32.totalorder %s26, 0
      %p220 = por %p218, %p219
      %p221 = scmp.ne.s32.totalorder %s210, %s213
      %p222 = scmp.eq.s32.totalorder %s31, 3
      %p223 = por %p221, %p222
      %p224 = scmp.ne.s32.totalorder %s213, %s214
      %p225 = scmp.eq.s32.totalorder %s31, 0
      %p226 = por %p224, %p225
      %p227 = scmp.ne.s32.totalorder %s213, %s214
      %p228 = scmp.eq.s32.totalorder %s32, 3
      %p229 = por %p227, %p228
      %p231 = scmp.ne.s32.totalorder %s214, %s230
      %p232 = scmp.eq.s32.totalorder %s32, 0
      %p233 = por %p231, %p232
      %s234 = ssub.s32 %s34, %s41
      %p235 = scmp.eq.s32.totalorder %s234, 0
      %s237 = sadd.s32 %s236, 1
      %s238 = scalar_select %p235, %s236, %s237
      %p241 = pneg %p235
      %p242 = scmp.eq.s32.totalorder %s26, 3
      %p243 = por %p241, %p242
      %p244 = scmp.ne.s32.totalorder %s236, %s239
      %p245 = scmp.eq.s32.totalorder %s26, 0
      %p246 = por %p244, %p245
      %p247 = scmp.ne.s32.totalorder %s236, %s239
      %p248 = scmp.eq.s32.totalorder %s31, 3
      %p249 = por %p247, %p248
      %p250 = scmp.ne.s32.totalorder %s239, %s240
      %p251 = scmp.eq.s32.totalorder %s31, 0
      %p252 = por %p250, %p251
      %p253 = scmp.ne.s32.totalorder %s239, %s240
      %p254 = scmp.eq.s32.totalorder %s32, 3
      %p255 = por %p253, %p254
      %p257 = scmp.ne.s32.totalorder %s240, %s256
      %p258 = scmp.eq.s32.totalorder %s32, 0
      %p259 = por %p257, %p258
      %s260 = ssub.s32 %s34, %s41
      %p261 = scmp.eq.s32.totalorder %s260, 0
      %s263 = sadd.s32 %s262, 1
      %s264 = scalar_select %p261, %s262, %s263
      %p267 = pneg %p261
      %p268 = scmp.eq.s32.totalorder %s26, 3
      %p269 = por %p267, %p268
      %p270 = scmp.ne.s32.totalorder %s262, %s265
      %p271 = scmp.eq.s32.totalorder %s26, 0
      %p272 = por %p270, %p271
      %p273 = scmp.ne.s32.totalorder %s262, %s265
      %p274 = scmp.eq.s32.totalorder %s31, 3
      %p275 = por %p273, %p274
      %p276 = scmp.ne.s32.totalorder %s265, %s266
      %p277 = scmp.eq.s32.totalorder %s31, 0
      %p278 = por %p276, %p277
      %p279 = scmp.ne.s32.totalorder %s265, %s266
      %p280 = scmp.eq.s32.totalorder %s32, 3
      %p281 = por %p279, %p280
      %p283 = scmp.ne.s32.totalorder %s266, %s282
      %p284 = scmp.eq.s32.totalorder %s32, 0
      %p285 = por %p283, %p284
      %s286 = ssub.s32 %s34, %s41
      %p287 = scmp.eq.s32.totalorder %s286, 0
      %s289 = sadd.s32 %s288, 1
      %s290 = scalar_select %p287, %s288, %s289
      %p293 = pneg %p287
      %p294 = scmp.eq.s32.totalorder %s26, 3
      %p295 = por %p293, %p294
      %p296 = scmp.ne.s32.totalorder %s288, %s291
      %p297 = scmp.eq.s32.totalorder %s26, 0
      %p298 = por %p296, %p297
      %p299 = scmp.ne.s32.totalorder %s288, %s291
      %p300 = scmp.eq.s32.totalorder %s31, 3
      %p301 = por %p299, %p300
      %p302 = scmp.ne.s32.totalorder %s291, %s292
      %p303 = scmp.eq.s32.totalorder %s31, 0
      %p304 = por %p302, %p303
      %p305 = scmp.ne.s32.totalorder %s291, %s292
      %p306 = scmp.eq.s32.totalorder %s32, 3
      %p307 = por %p305, %p306
      %p309 = scmp.ne.s32.totalorder %s292, %s308
      %p310 = scmp.eq.s32.totalorder %s32, 0
      %p311 = por %p309, %p310
      %s312 = ssub.s32 %s34, %s41
      %p313 = scmp.eq.s32.totalorder %s312, 0
      %s315 = sadd.s32 %s314, 1
      %s316 = scalar_select %p313, %s314, %s315
      %p319 = pneg %p313
      %p320 = scmp.eq.s32.totalorder %s26, 3
      %p321 = por %p319, %p320
      %p322 = scmp.ne.s32.totalorder %s314, %s317
      %p323 = scmp.eq.s32.totalorder %s26, 0
      %p324 = por %p322, %p323
      %p325 = scmp.ne.s32.totalorder %s314, %s317
      %p326 = scmp.eq.s32.totalorder %s31, 3
      %p327 = por %p325, %p326
      %p328 = scmp.ne.s32.totalorder %s317, %s318
      %p329 = scmp.eq.s32.totalorder %s31, 0
      %p330 = por %p328, %p329
      %p331 = scmp.ne.s32.totalorder %s317, %s318
      %p332 = scmp.eq.s32.totalorder %s32, 3
      %p333 = por %p331, %p332
      %p335 = scmp.ne.s32.totalorder %s318, %s334
      %p336 = scmp.eq.s32.totalorder %s32, 0
      %p337 = por %p335, %p336
      %s338 = ssub.s32 %s34, %s41
      %p339 = scmp.eq.s32.totalorder %s338, 0
      %s341 = sadd.s32 %s340, 1
      %s342 = scalar_select %p339, %s340, %s341
      %p345 = pneg %p339
      %p346 = scmp.eq.s32.totalorder %s26, 3
      %p347 = por %p345, %p346
      %p348 = scmp.ne.s32.totalorder %s340, %s343
      %p349 = scmp.eq.s32.totalorder %s26, 0
      %p350 = por %p348, %p349
      %p351 = scmp.ne.s32.totalorder %s340, %s343
      %p352 = scmp.eq.s32.totalorder %s31, 3
      %p353 = por %p351, %p352
      %p354 = scmp.ne.s32.totalorder %s343, %s344
      %p355 = scmp.eq.s32.totalorder %s31, 0
      %p356 = por %p354, %p355
      %p357 = scmp.ne.s32.totalorder %s343, %s344
      %p358 = scmp.eq.s32.totalorder %s32, 3
      %p359 = por %p357, %p358
      %p361 = scmp.ne.s32.totalorder %s344, %s360
      %p362 = scmp.eq.s32.totalorder %s32, 0
      %p363 = por %p361, %p362
      %s364 = ssub.s32 %s34, %s41
      %p365 = scmp.eq.s32.totalorder %s364, 0
      %s367 = sadd.s32 %s366, 1
      %s368 = scalar_select %p365, %s366, %s367
      %p371 = pneg %p365
      %p372 = scmp.eq.s32.totalorder %s26, 3
      %p373 = por %p371, %p372
      %p374 = scmp.ne.s32.totalorder %s366, %s369
      %p375 = scmp.eq.s32.totalorder %s26, 0
      %p376 = por %p374, %p375
      %p377 = scmp.ne.s32.totalorder %s366, %s369
      %p378 = scmp.eq.s32.totalorder %s31, 3
      %p379 = por %p377, %p378
      %p380 = scmp.ne.s32.totalorder %s369, %s370
      %p381 = scmp.eq.s32.totalorder %s31, 0
      %p382 = por %p380, %p381
      %p383 = scmp.ne.s32.totalorder %s369, %s370
      %p384 = scmp.eq.s32.totalorder %s32, 3
      %p385 = por %p383, %p384
      %p387 = scmp.ne.s32.totalorder %s370, %s386
      %p388 = scmp.eq.s32.totalorder %s32, 0
      %p389 = por %p387, %p388
      %s390 = ssub.s32 %s34, %s41
      %p391 = scmp.eq.s32.totalorder %s390, 0
      %s393 = sadd.s32 %s392, 1
      %s394 = scalar_select %p391, %s392, %s393
      %p397 = pneg %p391
      %p398 = scmp.eq.s32.totalorder %s26, 3
      %p399 = por %p397, %p398
      %p400 = scmp.ne.s32.totalorder %s392, %s395
      %p401 = scmp.eq.s32.totalorder %s26, 0
      %p402 = por %p400, %p401
      %p403 = scmp.ne.s32.totalorder %s392, %s395
      %p404 = scmp.eq.s32.totalorder %s31, 3
      %p405 = por %p403, %p404
      %p406 = scmp.ne.s32.totalorder %s395, %s396
      %p407 = scmp.eq.s32.totalorder %s31, 0
      %p408 = por %p406, %p407
      %p409 = scmp.ne.s32.totalorder %s395, %s396
      %p410 = scmp.eq.s32.totalorder %s32, 3
      %p411 = por %p409, %p410
      %p413 = scmp.ne.s32.totalorder %s396, %s412
      %p414 = scmp.eq.s32.totalorder %s32, 0
      %p415 = por %p413, %p414
      %s416 = ssub.s32 %s34, %s41
      %p417 = scmp.eq.s32.totalorder %s416, 0
      %s419 = sadd.s32 %s418, 1
      %s420 = scalar_select %p417, %s418, %s419
      %p423 = pneg %p417
      %p424 = scmp.eq.s32.totalorder %s26, 3
      %p425 = por %p423, %p424
      %p426 = scmp.ne.s32.totalorder %s418, %s421
      %p427 = scmp.eq.s32.totalorder %s26, 0
      %p428 = por %p426, %p427
      %p429 = scmp.ne.s32.totalorder %s418, %s421
      %p430 = scmp.eq.s32.totalorder %s31, 3
      %p431 = por %p429, %p430
      %p432 = scmp.ne.s32.totalorder %s421, %s422
      %p433 = scmp.eq.s32.totalorder %s31, 0
      %p434 = por %p432, %p433
      %p435 = scmp.ne.s32.totalorder %s421, %s422
      %p436 = scmp.eq.s32.totalorder %s32, 3
      %p437 = por %p435, %p436
      %p439 = scmp.ne.s32.totalorder %s422, %s438
      %p440 = scmp.eq.s32.totalorder %s32, 0
      %p441 = por %p439, %p440
      %s442 = ssub.s32 %s34, %s41
      %p443 = scmp.eq.s32.totalorder %s442, 0
      %s445 = sadd.s32 %s444, 1
      %s446 = scalar_select %p443, %s444, %s445
      %p449 = pneg %p443
      %p450 = scmp.eq.s32.totalorder %s26, 3
      %p451 = por %p449, %p450
      %p452 = scmp.ne.s32.totalorder %s444, %s447
      %p453 = scmp.eq.s32.totalorder %s26, 0
      %p454 = por %p452, %p453
      %p455 = scmp.ne.s32.totalorder %s444, %s447
      %p456 = scmp.eq.s32.totalorder %s31, 3
      %p457 = por %p455, %p456
      %p458 = scmp.ne.s32.totalorder %s447, %s448
      %p459 = scmp.eq.s32.totalorder %s31, 0
      %p460 = por %p458, %p459
      %p461 = scmp.ne.s32.totalorder %s447, %s448
      %p462 = scmp.eq.s32.totalorder %s32, 3
      %p463 = por %p461, %p462
      %p465 = scmp.ne.s32.totalorder %s448, %s464
      %p466 = scmp.eq.s32.totalorder %s32, 0
      %p467 = por %p465, %p466
      %s468 = ssub.s32 %s33, %s45
      %p469 = scmp.eq.s32.totalorder %s468, 0
      %s471 = sadd.s32 %s470, 1
      %s472 = scalar_select %p469, %s470, %s471
      %p475 = pneg %p469
      %p476 = scmp.eq.s32.totalorder %s26, 3
      %p477 = por %p475, %p476
      %p478 = scmp.ne.s32.totalorder %s470, %s473
      %p479 = scmp.eq.s32.totalorder %s26, 0
      %p480 = por %p478, %p479
      %p481 = scmp.ne.s32.totalorder %s470, %s473
      %p482 = scmp.eq.s32.totalorder %s31, 3
      %p483 = por %p481, %p482
      %p484 = scmp.ne.s32.totalorder %s473, %s474
      %p485 = scmp.eq.s32.totalorder %s31, 0
      %p486 = por %p484, %p485
      %p487 = scmp.ne.s32.totalorder %s473, %s474
      %p488 = scmp.eq.s32.totalorder %s32, 3
      %p489 = por %p487, %p488
      %p491 = scmp.ne.s32.totalorder %s474, %s490
      %p492 = scmp.eq.s32.totalorder %s32, 0
      %p493 = por %p491, %p492
      %p494 = scmp.le.s32.totalorder 1, %s26
      %p495 = scmp.lt.s32.totalorder %s26, 5
      %p496 = pnand %p494, %p495
      %p497 = pneg %p496
      // Predicated region
      $region9: #{tpu_custom_call.1} parent=5 // pred_check
        _
      $region10: #{tpu_custom_call.1} parent=5 // pred_check_branch
        %499 = sbr.rel (%p496) target = $region12
      $region11: #{tpu_custom_call.1} parent=5 // pred_region
        %s500 = ssub.s32 %s26, 1
        // Predicated region
        $region13: #{tpu_custom_call.1} parent=11 // pred_check
          %p501 = pneg %p85
        $region14: #{tpu_custom_call.1} parent=11 // pred_check_branch
          %503 = sbr.rel (%p501) target = $region16
        $region15: #{tpu_custom_call.1} parent=11 // pred_region
          _
        $region16: #{tpu_custom_call.1} parent=11 // pred_fallthru
          _
        // Predicated region
        $region17: #{tpu_custom_call.1} parent=11 // pred_check
          %p504 = pneg %p106
        $region18: #{tpu_custom_call.1} parent=11 // pred_check_branch
          %506 = sbr.rel (%p504) target = $region20
        $region19: #{tpu_custom_call.1} parent=11 // pred_region
          _
        $region20: #{tpu_custom_call.1} parent=11 // pred_fallthru
          _
        // Predicated region
        $region21: #{tpu_custom_call.1} parent=11 // pred_check
          %p507 = pneg %p127
        $region22: #{tpu_custom_call.1} parent=11 // pred_check_branch
          %509 = sbr.rel (%p507) target = $region24
        $region23: #{tpu_custom_call.1} parent=11 // pred_region
          _
        $region24: #{tpu_custom_call.1} parent=11 // pred_fallthru
          _
        // Predicated region
        $region25: #{tpu_custom_call.1} parent=11 // pred_check
          %p510 = pneg %p148
        $region26: #{tpu_custom_call.1} parent=11 // pred_check_branch
          %512 = sbr.rel (%p510) target = $region28
        $region27: #{tpu_custom_call.1} parent=11 // pred_region
          _
        $region28: #{tpu_custom_call.1} parent=11 // pred_fallthru
          _
      $region12: #{tpu_custom_call.1} parent=5 // pred_fallthru
        _
      %p513 = scmp.lt.s32.totalorder %s26, 4
      // Predicated region
      $region29: #{tpu_custom_call.1} parent=5 // pred_check
        %p514 = pneg %p513
      $region30: #{tpu_custom_call.1} parent=5 // pred_check_branch
        %516 = sbr.rel (%p514) target = $region32
      $region31: #{tpu_custom_call.1} parent=5 // pred_region
        // Predicated region
        $region33: #{tpu_custom_call.1} parent=31 // pred_check
          %p517 = pneg %p58
        $region34: #{tpu_custom_call.1} parent=31 // pred_check_branch
          %519 = sbr.rel (%p517) target = $region36
        $region35: #{tpu_custom_call.1} parent=31 // pred_region
          %p520 = scmp.lt.s32.totalorder %s33, 1
          %s521 = scalar_select %p520, %s33, 1
          %s522 = smul.addr %s521, 8
          %s523 = scalar_lea.vmem %s0, %s522
        $region36: #{tpu_custom_call.1} parent=31 // pred_fallthru
          _
        // Predicated region
        $region37: #{tpu_custom_call.1} parent=31 // pred_check
          %p524 = pneg %p168
        $region38: #{tpu_custom_call.1} parent=31 // pred_check_branch
          %526 = sbr.rel (%p524) target = $region40
        $region39: #{tpu_custom_call.1} parent=31 // pred_region
          %p527 = scmp.lt.s32.totalorder %s34, 1
          %s528 = scalar_select %p527, %s34, 1
          %s529 = smul.addr %s528, 4
          %s530 = smul.addr %s529, 8
          %s531 = scalar_lea.vmem %s5, %s530
        $region40: #{tpu_custom_call.1} parent=31 // pred_fallthru
          _
        // Predicated region
        $region41: #{tpu_custom_call.1} parent=31 // pred_check
          %p532 = pneg %p194
        $region42: #{tpu_custom_call.1} parent=31 // pred_check_branch
          %534 = sbr.rel (%p532) target = $region44
        $region43: #{tpu_custom_call.1} parent=31 // pred_region
          %p535 = scmp.lt.s32.totalorder %s34, 1
          %s536 = scalar_select %p535, %s34, 1
          %s537 = scalar_lea.vmem %s6, %s536
        $region44: #{tpu_custom_call.1} parent=31 // pred_fallthru
          _
        // Predicated region
        $region45: #{tpu_custom_call.1} parent=31 // pred_check
          %p538 = pneg %p220
        $region46: #{tpu_custom_call.1} parent=31 // pred_check_branch
          %540 = sbr.rel (%p538) target = $region48
        $region47: #{tpu_custom_call.1} parent=31 // pred_region
          %p541 = scmp.lt.s32.totalorder %s34, 1
          %s542 = scalar_select %p541, %s34, 1
          %s543 = smul.addr %s542, 4
          %s544 = smul.addr %s543, 8
          %s545 = scalar_lea.vmem %s7, %s544
        $region48: #{tpu_custom_call.1} parent=31 // pred_fallthru
          _
        // Predicated region
        $region49: #{tpu_custom_call.1} parent=31 // pred_check
          %p546 = pneg %p246
        $region50: #{tpu_custom_call.1} parent=31 // pred_check_branch
          %548 = sbr.rel (%p546) target = $region52
        $region51: #{tpu_custom_call.1} parent=31 // pred_region
          %p549 = scmp.lt.s32.totalorder %s34, 1
          %s550 = scalar_select %p549, %s34, 1
          %s551 = scalar_lea.vmem %s8, %s550
        $region52: #{tpu_custom_call.1} parent=31 // pred_fallthru
          _
        // Predicated region
        $region53: #{tpu_custom_call.1} parent=31 // pred_check
          %p552 = pneg %p272
        $region54: #{tpu_custom_call.1} parent=31 // pred_check_branch
          %554 = sbr.rel (%p552) target = $region56
        $region55: #{tpu_custom_call.1} parent=31 // pred_region
          %p555 = scmp.lt.s32.totalorder %s34, 1
          %s556 = scalar_select %p555, %s34, 1
          %s557 = scalar_lea.vmem %s9, %s556
        $region56: #{tpu_custom_call.1} parent=31 // pred_fallthru
          _
        // Predicated region
        $region57: #{tpu_custom_call.1} parent=31 // pred_check
          %p558 = pneg %p298
        $region58: #{tpu_custom_call.1} parent=31 // pred_check_branch
          %560 = sbr.rel (%p558) target = $region60
        $region59: #{tpu_custom_call.1} parent=31 // pred_region
          %p561 = scmp.lt.s32.totalorder %s34, 1
          %s562 = scalar_select %p561, %s34, 1
          %s563 = scalar_lea.vmem %s10, %s562
        $region60: #{tpu_custom_call.1} parent=31 // pred_fallthru
          _
        // Predicated region
        $region61: #{tpu_custom_call.1} parent=31 // pred_check
          %p564 = pneg %p324
        $region62: #{tpu_custom_call.1} parent=31 // pred_check_branch
          %566 = sbr.rel (%p564) target = $region64
        $region63: #{tpu_custom_call.1} parent=31 // pred_region
          %p567 = scmp.lt.s32.totalorder %s34, 1
          %s568 = scalar_select %p567, %s34, 1
          %s569 = smul.addr %s568, 4
          %s570 = smul.addr %s569, 8
          %s571 = scalar_lea.vmem %s11, %s570
        $region64: #{tpu_custom_call.1} parent=31 // pred_fallthru
          _
        // Predicated region
        $region65: #{tpu_custom_call.1} parent=31 // pred_check
          %p572 = pneg %p350
        $region66: #{tpu_custom_call.1} parent=31 // pred_check_branch
          %574 = sbr.rel (%p572) target = $region68
        $region67: #{tpu_custom_call.1} parent=31 // pred_region
          %p575 = scmp.lt.s32.totalorder %s34, 1
          %s576 = scalar_select %p575, %s34, 1
          %s577 = scalar_lea.vmem %s12, %s576
        $region68: #{tpu_custom_call.1} parent=31 // pred_fallthru
          _
        // Predicated region
        $region69: #{tpu_custom_call.1} parent=31 // pred_check
          %p578 = pneg %p376
        $region70: #{tpu_custom_call.1} parent=31 // pred_check_branch
          %580 = sbr.rel (%p578) target = $region72
        $region71: #{tpu_custom_call.1} parent=31 // pred_region
          %p581 = scmp.lt.s32.totalorder %s34, 1
          %s582 = scalar_select %p581, %s34, 1
          %s583 = smul.addr %s582, 8
          %s584 = smul.addr %s583, 8
          %s585 = scalar_lea.vmem %s13, %s584
        $region72: #{tpu_custom_call.1} parent=31 // pred_fallthru
          _
        // Predicated region
        $region73: #{tpu_custom_call.1} parent=31 // pred_check
          %p586 = pneg %p402
        $region74: #{tpu_custom_call.1} parent=31 // pred_check_branch
          %588 = sbr.rel (%p586) target = $region76
        $region75: #{tpu_custom_call.1} parent=31 // pred_region
          %p589 = scmp.lt.s32.totalorder %s34, 1
          %s590 = scalar_select %p589, %s34, 1
          %s591 = scalar_lea.vmem %s14, %s590
        $region76: #{tpu_custom_call.1} parent=31 // pred_fallthru
          _
        // Predicated region
        $region77: #{tpu_custom_call.1} parent=31 // pred_check
          %p592 = pneg %p428
        $region78: #{tpu_custom_call.1} parent=31 // pred_check_branch
          %594 = sbr.rel (%p592) target = $region80
        $region79: #{tpu_custom_call.1} parent=31 // pred_region
          %p595 = scmp.lt.s32.totalorder %s34, 1
          %s596 = scalar_select %p595, %s34, 1
          %s597 = scalar_lea.vmem %s15, %s596
        $region80: #{tpu_custom_call.1} parent=31 // pred_fallthru
          _
        // Predicated region
        $region81: #{tpu_custom_call.1} parent=31 // pred_check
          %p598 = pneg %p454
        $region82: #{tpu_custom_call.1} parent=31 // pred_check_branch
          %600 = sbr.rel (%p598) target = $region84
        $region83: #{tpu_custom_call.1} parent=31 // pred_region
          %p601 = scmp.lt.s32.totalorder %s34, 1
          %s602 = scalar_select %p601, %s34, 1
          %s603 = scalar_lea.vmem %s16, %s602
        $region84: #{tpu_custom_call.1} parent=31 // pred_fallthru
          _
      $region32: #{tpu_custom_call.1} parent=5 // pred_fallthru
        _
      %p604 = scmp.le.s32.totalorder 1, %s26
      %p605 = scmp.lt.s32.totalorder %s26, 5
      %p606 = pnand %p604, %p605
      %p607 = pneg %p606
      // Predicated region
      $region85: #{tpu_custom_call.1} parent=5 // pred_check
        _
      $region86: #{tpu_custom_call.1} parent=5 // pred_check_branch
        %609 = sbr.rel (%p606) target = $region88
      $region87: #{tpu_custom_call.1} parent=5 // pred_region
        %s610 = ssub.s32 %s26, 1
        %p611 = scmp.lt.s32.totalorder %s35, 1
        %s612 = scalar_select %p611, %s35, 1
        %s613 = smul.addr %s612, 8
        %s614 = scalar_lea.vmem %s0, %s613
        %p615 = pneg %p64
        %p616 = pneg %p61
        %p617 = pneg %p85
        %p618 = pneg %p82
        %p619 = pneg %p106
        %p620 = pneg %p103
        %p621 = pneg %p127
        %p622 = pneg %p124
        %p623 = pneg %p148
        %p624 = pneg %p145
        %p625 = scmp.lt.s32.totalorder %s36, 1
        %s626 = scalar_select %p625, %s36, 1
        %s627 = smul.addr %s626, 4
        %s628 = smul.addr %s627, 8
        %s629 = scalar_lea.vmem %s5, %s628
        %p630 = pneg %p174
        %p631 = pneg %p171
        %p632 = scmp.lt.s32.totalorder %s36, 1
        %s633 = scalar_select %p632, %s36, 1
        %s634 = scalar_lea.vmem %s6, %s633
        %p635 = pneg %p200
        %p636 = pneg %p197
        %p637 = scmp.lt.s32.totalorder %s36, 1
        %s638 = scalar_select %p637, %s36, 1
        %s639 = smul.addr %s638, 4
        %s640 = smul.addr %s639, 8
        %s641 = scalar_lea.vmem %s7, %s640
        %p642 = pneg %p226
        %p643 = pneg %p223
        %p644 = scmp.lt.s32.totalorder %s36, 1
        %s645 = scalar_select %p644, %s36, 1
        %s646 = scalar_lea.vmem %s8, %s645
        %p647 = pneg %p252
        %p648 = pneg %p249
        %p649 = scmp.lt.s32.totalorder %s36, 1
        %s650 = scalar_select %p649, %s36, 1
        %s651 = scalar_lea.vmem %s9, %s650
        %p652 = pneg %p278
        %p653 = pneg %p275
        %p654 = scmp.lt.s32.totalorder %s36, 1
        %s655 = scalar_select %p654, %s36, 1
        %s656 = scalar_lea.vmem %s10, %s655
        %p657 = pneg %p304
        %p658 = pneg %p301
        %p659 = scmp.lt.s32.totalorder %s36, 1
        %s660 = scalar_select %p659, %s36, 1
        %s661 = smul.addr %s660, 4
        %s662 = smul.addr %s661, 8
        %s663 = scalar_lea.vmem %s11, %s662
        %p664 = pneg %p330
        %p665 = pneg %p327
        %p666 = scmp.lt.s32.totalorder %s36, 1
        %s667 = scalar_select %p666, %s36, 1
        %s668 = scalar_lea.vmem %s12, %s667
        %p669 = pneg %p356
        %p670 = pneg %p353
        %p671 = scmp.lt.s32.totalorder %s36, 1
        %s672 = scalar_select %p671, %s36, 1
        %s673 = smul.addr %s672, 8
        %s674 = smul.addr %s673, 8
        %s675 = scalar_lea.vmem %s13, %s674
        %p676 = pneg %p382
        %p677 = pneg %p379
        %p678 = scmp.lt.s32.totalorder %s36, 1
        %s679 = scalar_select %p678, %s36, 1
        %s680 = scalar_lea.vmem %s14, %s679
        %p681 = pneg %p408
        %p682 = pneg %p405
        %p683 = scmp.lt.s32.totalorder %s36, 1
        %s684 = scalar_select %p683, %s36, 1
        %s685 = scalar_lea.vmem %s15, %s684
        %p686 = pneg %p434
        %p687 = pneg %p431
        %p688 = scmp.lt.s32.totalorder %s36, 1
        %s689 = scalar_select %p688, %s36, 1
        %s690 = scalar_lea.vmem %s16, %s689
        %p691 = pneg %p460
        %p692 = pneg %p457
        %p693 = pneg %p486
        %p694 = pneg %p483
        %s695 = sand.u32 %s473, 1
        %s696 = scalar_lea.sflag [#allocation4], %s695
        %s697 = sand.u32 %s473, 1
        %s698 = smul.addr %s697, 8
        %s699 = scalar_lea.vmem [#allocation3], %s698
        %p700 = scmp.lt.s32.totalorder %s35, 1
        %s701 = scalar_select %p700, %s35, 1
        %s702 = smul.addr %s701, 8
        %s703 = scalar_lea.vmem %s0, %s702
        %p704 = scmp.lt.s32.totalorder %s36, 1
        %s705 = scalar_select %p704, %s36, 1
        %s706 = smul.addr %s705, 4
        %s707 = smul.addr %s706, 8
        %s708 = scalar_lea.vmem %s5, %s707
        %p709 = scmp.lt.s32.totalorder %s36, 1
        %s710 = scalar_select %p709, %s36, 1
        %s711 = scalar_lea.vmem %s6, %s710
        %p712 = scmp.lt.s32.totalorder %s36, 1
        %s713 = scalar_select %p712, %s36, 1
        %s714 = smul.addr %s713, 4
        %s715 = smul.addr %s714, 8
        %s716 = scalar_lea.vmem %s7, %s715
        %p717 = scmp.lt.s32.totalorder %s36, 1
        %s718 = scalar_select %p717, %s36, 1
        %s719 = scalar_lea.vmem %s8, %s718
        %p720 = scmp.lt.s32.totalorder %s36, 1
        %s721 = scalar_select %p720, %s36, 1
        %s722 = scalar_lea.vmem %s9, %s721
        %p723 = scmp.lt.s32.totalorder %s36, 1
        %s724 = scalar_select %p723, %s36, 1
        %s725 = scalar_lea.vmem %s10, %s724
        %p726 = scmp.lt.s32.totalorder %s36, 1
        %s727 = scalar_select %p726, %s36, 1
        %s728 = smul.addr %s727, 4
        %s729 = smul.addr %s728, 8
        %s730 = scalar_lea.vmem %s11, %s729
        %p731 = scmp.lt.s32.totalorder %s36, 1
        %s732 = scalar_select %p731, %s36, 1
        %s733 = scalar_lea.vmem %s12, %s732
        %p734 = scmp.lt.s32.totalorder %s36, 1
        %s735 = scalar_select %p734, %s36, 1
        %s736 = smul.addr %s735, 8
        %s737 = smul.addr %s736, 8
        %s738 = scalar_lea.vmem %s13, %s737
        %p739 = scmp.lt.s32.totalorder %s36, 1
        %s740 = scalar_select %p739, %s36, 1
        %s741 = scalar_lea.vmem %s14, %s740
        %p742 = scmp.lt.s32.totalorder %s36, 1
        %s743 = scalar_select %p742, %s36, 1
        %s744 = scalar_lea.vmem %s15, %s743
        %p745 = scmp.lt.s32.totalorder %s36, 1
        %s746 = scalar_select %p745, %s36, 1
        %s747 = scalar_lea.vmem %s16, %s746
        %p748 = scmp.eq.s32.totalorder %s36, 0
        // Predicated region
        $region89: #{tpu_custom_call.1} parent=87 // pred_check
          %p749 = pneg %p748
        $region90: #{tpu_custom_call.1} parent=87 // pred_check_branch
          %751 = sbr.rel (%p749) target = $region92
        $region91: #{tpu_custom_call.1} parent=87 // pred_region
          %v752 = vld [vmem:[%s703] sm:$0xff]
          %v753 = vld [vmem:[%s1] sm:$0xff]
          %v754 = vld [vmem:[%s1 + $0x8] sm:$0xff]
          %v755 = vld [vmem:[%s1 + $0x10] sm:$0xff]
          %v756 = vld [vmem:[%s1 + $0x18] sm:$0xff]
          %v757 = vld [vmem:[%s1 + $0x20] sm:$0xff]
          %v758 = vld [vmem:[%s1 + $0x28] sm:$0xff]
          %v759 = vld [vmem:[%s1 + $0x30] sm:$0xff]
          %v760 = vld [vmem:[%s1 + $0x38] sm:$0xff]
          %v761 = vld [vmem:[%s2] sm:$0x1]
          %v763 = vlaneseq
          %v764 = vshrl.u32 %v763, 7
          %v765 = vsub.s32 0, %v764
          %v766 = vrot.slane %v761, %v765
          %vm768 = vcmask 523264
          %v770 = vsel %vm768, %v752, 0
          %772 = vmatprep.subr.mxu0 0.0
          %773 = vmatpush1.msra.mxu0 0.0
          %774 = vmatprep.subr.mxu0 0.0
          %775 = vmatpush1.msra.mxu0 0.0
          %776 = vmatprep.subr.mxu0 0.0
          %777 = vmatpush1.msra.mxu0 0.0
          %778 = vmatprep.subr.mxu0 0.0
          %779 = vmatpush1.msra.mxu0 0.0
          %780 = vmatprep.subr.mxu0 0.0
          %781 = vmatpush1.msra.mxu0 0.0
          %782 = vmatprep.subr.mxu0 0.0
          %783 = vmatpush1.msra.mxu0 0.0
          %784 = vmatprep.subr.mxu0 0.0
          %785 = vmatpush1.msra.mxu0 0.0
          %786 = vmatprep.subr.mxu0 0.0
          %787 = vmatpush1.msra.mxu0 0.0
          %788 = vmatprep.subr.mxu0 0.0
          %789 = vmatpush1.msra.mxu0 %v760
          %790 = vmatprep.subr.mxu0 0.0
          %791 = vmatpush1.msra.mxu0 %v759
          %792 = vmatprep.subr.mxu0 0.0
          %793 = vmatpush1.msra.mxu0 %v758
          %794 = vmatprep.subr.mxu0 0.0
          %795 = vmatpush1.msra.mxu0 %v757
          %796 = vmatprep.subr.mxu0 0.0
          %797 = vmatpush1.msra.mxu0 %v756
          %798 = vmatprep.subr.mxu0 0.0
          %799 = vmatpush1.msra.mxu0 %v755
          %800 = vmatprep.subr.mxu0 0.0
          %801 = vmatpush1.msra.mxu0 %v754
          %802 = vmatprep.subr.mxu0 0.0
          %803 = vmatpush1.msra.mxu0 %v753
          %804 = vmatprep.subr.mxu0 0.0
          %805 = vmatpush2.msra.mxu0 0.0
          %806 = vmatprep.subr.mxu0 0.0
          %807 = vmatpush2.msra.mxu0 0.0
          %808 = vmatprep.subr.mxu0 0.0
          %809 = vmatpush2.msra.mxu0 0.0
          %810 = vmatprep.subr.mxu0 0.0
          %811 = vmatpush2.msra.mxu0 0.0
          %812 = vmatprep.subr.mxu0 0.0
          %813 = vmatpush2.msra.mxu0 0.0
          %814 = vmatprep.subr.mxu0 0.0
          %815 = vmatpush2.msra.mxu0 0.0
          %816 = vmatprep.subr.mxu0 0.0
          %817 = vmatpush2.msra.mxu0 0.0
          %818 = vmatprep.subr.mxu0 0.0
          %819 = vmatpush2.msra.mxu0 0.0
          %820 = vmatprep.subr.mxu0 0.0
          %821 = vmatpush2.msra.mxu0 0.0
          %822 = vmatprep.subr.mxu0 0.0
          %823 = vmatpush2.msra.mxu0 0.0
          %824 = vmatprep.subr.mxu0 0.0
          %825 = vmatpush2.msra.mxu0 0.0
          %826 = vmatprep.subr.mxu0 0.0
          %827 = vmatpush2.msra.mxu0 0.0
          %828 = vmatprep.subr.mxu0 0.0
          %829 = vmatpush2.msra.mxu0 0.0
          %830 = vmatprep.subr.mxu0 0.0
          %831 = vmatpush2.msra.mxu0 0.0
          %832 = vmatprep.subr.mxu0 0.0
          %833 = vmatpush2.msra.mxu0 0.0
          %834 = vmatprep.subr.mxu0 0.0
          %835 = vmatpush2.msra.mxu0 0.0
          %836 = vmatprep.mubr.f32.mxu0 0.0
          %837 = vmatmul.mubr.f32.gmra.mxu0 %v770
          %v838 = vpop.f32.mrf.mxu0
          %v839 = vadd.f32 %v766, %v838
          %v840 = vpop.f32.mrf.mxu0
          %841 = vdwg.mxu0
          %v842 = vmax.f32 %v839, 0.0
          %v843 = vld [vmem:[%s3] sm:$0x1]
          %v844 = vld [vmem:[%s4] sm:$0x1]
          %vm845 = vcmask 261120
          %v846 = vsel %vm845, %v842, 0.0
          %847 = vadd.xlane.f32.xlu0 %v846
          %v848 = vpop.xlane.xlu0 %847
          %v849 = vrcp.pop 32.0
          %v850 = vmul.f32 %v848, %v849
          %v851 = vsub.f32 %v842, %v850
          %v852 = vmul.f32 %v851, %v851
          %v853 = vsel %vm845, %v852, 0.0
          %854 = vadd.xlane.f32.xlu0 %v853
          %v855 = vpop.xlane.xlu0 %854
          %v856 = vmul.f32 %v855, %v849
          %v857 = vadd.f32 %v856, 1e-05
          %v858 = vrsqrt.pop %v857
          %v859 = vmul.f32 %v851, %v858
          %v861 = vlaneseq
          %v862 = vshrl.u32 %v861, 7
          %v863 = vsub.s32 0, %v862
          %v864 = vrot.slane %v843, %v863
          %v866 = vmul.f32 %v859, %v864
          %v868 = vlaneseq
          %v869 = vshrl.u32 %v868, 7
          %v870 = vsub.s32 0, %v869
          %v871 = vrot.slane %v844, %v870
          %v873 = vadd.f32 %v866, %v871
          %874 = vst.msk [vmem:[#allocation2] sm:$0xff] %vm845, %v873
        $region92: #{tpu_custom_call.1} parent=87 // pred_fallthru
          _
        %v875 = vld [vmem:[#allocation2] sm:$0xff]
        %v876 = vld [vmem:[%s708] sm:$0xff]
        %v877 = vld [vmem:[%s708 + $0x8] sm:$0xff]
        %v878 = vld [vmem:[%s708 + $0x10] sm:$0xff]
        %v879 = vld [vmem:[%s708 + $0x18] sm:$0xff]
        %v880 = vld [vmem:[%s711] sm:$0x1]
        %v882 = vlaneseq
        %v883 = vshrl.u32 %v882, 7
        %v884 = vsub.s32 0, %v883
        %v885 = vrot.slane %v880, %v884
        %vm887 = vcmask 261120
        %v889 = vsel %vm887, %v875, 0
        %891 = vmatprep.subr.mxu0 0.0
        %892 = vmatpush1.msra.mxu0 0.0
        %893 = vmatprep.subr.mxu0 0.0
        %894 = vmatpush1.msra.mxu0 0.0
        %895 = vmatprep.subr.mxu0 0.0
        %896 = vmatpush1.msra.mxu0 0.0
        %897 = vmatprep.subr.mxu0 0.0
        %898 = vmatpush1.msra.mxu0 0.0
        %899 = vmatprep.subr.mxu0 0.0
        %900 = vmatpush1.msra.mxu0 0.0
        %901 = vmatprep.subr.mxu0 0.0
        %902 = vmatpush1.msra.mxu0 0.0
        %903 = vmatprep.subr.mxu0 0.0
        %904 = vmatpush1.msra.mxu0 0.0
        %905 = vmatprep.subr.mxu0 0.0
        %906 = vmatpush1.msra.mxu0 0.0
        %907 = vmatprep.subr.mxu0 0.0
        %908 = vmatpush1.msra.mxu0 0.0
        %909 = vmatprep.subr.mxu0 0.0
        %910 = vmatpush1.msra.mxu0 0.0
        %911 = vmatprep.subr.mxu0 0.0
        %912 = vmatpush1.msra.mxu0 0.0
        %913 = vmatprep.subr.mxu0 0.0
        %914 = vmatpush1.msra.mxu0 0.0
        %915 = vmatprep.subr.mxu0 0.0
        %916 = vmatpush1.msra.mxu0 %v879
        %917 = vmatprep.subr.mxu0 0.0
        %918 = vmatpush1.msra.mxu0 %v878
        %919 = vmatprep.subr.mxu0 0.0
        %920 = vmatpush1.msra.mxu0 %v877
        %921 = vmatprep.subr.mxu0 0.0
        %922 = vmatpush1.msra.mxu0 %v876
        %923 = vmatprep.subr.mxu0 0.0
        %924 = vmatpush2.msra.mxu0 0.0
        %925 = vmatprep.subr.mxu0 0.0
        %926 = vmatpush2.msra.mxu0 0.0
        %927 = vmatprep.subr.mxu0 0.0
        %928 = vmatpush2.msra.mxu0 0.0
        %929 = vmatprep.subr.mxu0 0.0
        %930 = vmatpush2.msra.mxu0 0.0
        %931 = vmatprep.subr.mxu0 0.0
        %932 = vmatpush2.msra.mxu0 0.0
        %933 = vmatprep.subr.mxu0 0.0
        %934 = vmatpush2.msra.mxu0 0.0
        %935 = vmatprep.subr.mxu0 0.0
        %936 = vmatpush2.msra.mxu0 0.0
        %937 = vmatprep.subr.mxu0 0.0
        %938 = vmatpush2.msra.mxu0 0.0
        %939 = vmatprep.subr.mxu0 0.0
        %940 = vmatpush2.msra.mxu0 0.0
        %941 = vmatprep.subr.mxu0 0.0
        %942 = vmatpush2.msra.mxu0 0.0
        %943 = vmatprep.subr.mxu0 0.0
        %944 = vmatpush2.msra.mxu0 0.0
        %945 = vmatprep.subr.mxu0 0.0
        %946 = vmatpush2.msra.mxu0 0.0
        %947 = vmatprep.subr.mxu0 0.0
        %948 = vmatpush2.msra.mxu0 0.0
        %949 = vmatprep.subr.mxu0 0.0
        %950 = vmatpush2.msra.mxu0 0.0
        %951 = vmatprep.subr.mxu0 0.0
        %952 = vmatpush2.msra.mxu0 0.0
        %953 = vmatprep.subr.mxu0 0.0
        %954 = vmatpush2.msra.mxu0 0.0
        %955 = vmatprep.mubr.f32.mxu0 0.0
        %956 = vmatmul.mubr.f32.gmra.mxu0 %v889
        %v957 = vpop.f32.mrf.mxu0
        %v958 = vadd.f32 %v885, %v957
        %v959 = vpop.f32.mrf.mxu0
        %960 = vdwg.mxu0
        %962 = vrot.lane.b32.xlu0 %v958, 96
        %v963 = vpop.permute.xlu0 %962
        %vm964 = vcmask 64512
        %v965 = vsel %vm964, %v958, 0
        %v967 = vsel %vm964, %v963, 0
        %969 = vmatprep.subr.mxu0 0.0
        %970 = vmatpush1.xpose.msra.mxu0 0.0
        %971 = vmatprep.subr.mxu0 0.0
        %972 = vmatpush1.xpose.msra.mxu0 0.0
        %973 = vmatprep.subr.mxu0 0.0
        %974 = vmatpush1.xpose.msra.mxu0 0.0
        %975 = vmatprep.subr.mxu0 0.0
        %976 = vmatpush1.xpose.msra.mxu0 0.0
        %977 = vmatprep.subr.mxu0 0.0
        %978 = vmatpush1.xpose.msra.mxu0 0.0
        %979 = vmatprep.subr.mxu0 0.0
        %980 = vmatpush1.xpose.msra.mxu0 0.0
        %981 = vmatprep.subr.mxu0 0.0
        %982 = vmatpush1.xpose.msra.mxu0 0.0
        %983 = vmatprep.subr.mxu0 0.0
        %984 = vmatpush1.xpose.msra.mxu0 0.0
        %985 = vmatprep.subr.mxu0 0.0
        %986 = vmatpush1.xpose.msra.mxu0 0.0
        %987 = vmatprep.subr.mxu0 0.0
        %988 = vmatpush1.xpose.msra.mxu0 0.0
        %989 = vmatprep.subr.mxu0 0.0
        %990 = vmatpush1.xpose.msra.mxu0 0.0
        %991 = vmatprep.subr.mxu0 0.0
        %992 = vmatpush1.xpose.msra.mxu0 0.0
        %993 = vmatprep.subr.mxu0 0.0
        %994 = vmatpush1.xpose.msra.mxu0 0.0
        %995 = vmatprep.subr.mxu0 0.0
        %996 = vmatpush1.xpose.msra.mxu0 0.0
        %997 = vmatprep.subr.mxu0 0.0
        %998 = vmatpush1.xpose.msra.mxu0 0.0
        %999 = vmatprep.subr.mxu0 0.0
        %1000 = vmatpush1.xpose.msra.mxu0 %v967
        %1001 = vmatprep.subr.mxu0 0.0
        %1002 = vmatpush2.xpose.msra.mxu0 0.0
        %1003 = vmatprep.subr.mxu0 0.0
        %1004 = vmatpush2.xpose.msra.mxu0 0.0
        %1005 = vmatprep.subr.mxu0 0.0
        %1006 = vmatpush2.xpose.msra.mxu0 0.0
        %1007 = vmatprep.subr.mxu0 0.0
        %1008 = vmatpush2.xpose.msra.mxu0 0.0
        %1009 = vmatprep.subr.mxu0 0.0
        %1010 = vmatpush2.xpose.msra.mxu0 0.0
        %1011 = vmatprep.subr.mxu0 0.0
        %1012 = vmatpush2.xpose.msra.mxu0 0.0
        %1013 = vmatprep.subr.mxu0 0.0
        %1014 = vmatpush2.xpose.msra.mxu0 0.0
        %1015 = vmatprep.subr.mxu0 0.0
        %1016 = vmatpush2.xpose.msra.mxu0 0.0
        %1017 = vmatprep.subr.mxu0 0.0
        %1018 = vmatpush2.xpose.msra.mxu0 0.0
        %1019 = vmatprep.subr.mxu0 0.0
        %1020 = vmatpush2.xpose.msra.mxu0 0.0
        %1021 = vmatprep.subr.mxu0 0.0
        %1022 = vmatpush2.xpose.msra.mxu0 0.0
        %1023 = vmatprep.subr.mxu0 0.0
        %1024 = vmatpush2.xpose.msra.mxu0 0.0
        %1025 = vmatprep.subr.mxu0 0.0
        %1026 = vmatpush2.xpose.msra.mxu0 0.0
        %1027 = vmatprep.subr.mxu0 0.0
        %1028 = vmatpush2.xpose.msra.mxu0 0.0
        %1029 = vmatprep.subr.mxu0 0.0
        %1030 = vmatpush2.xpose.msra.mxu0 0.0
        %1031 = vmatprep.subr.mxu0 0.0
        %1032 = vmatpush2.xpose.msra.mxu0 0.0
        %1033 = vmatprep.mubr.f32.mxu0 0.0
        %1034 = vmatmul.mubr.f32.gmra.mxu0 %v965
        %v1035 = vpop.f32.mrf.mxu0
        %v1036 = vadd.f32 0.0, %v1035
        %v1037 = vpop.f32.mrf.mxu0
        %1038 = vdwg.mxu0
        %v1039 = vmul.f32 %v1036, 0.35355338
        %v1040 = vsel %vm964, %v1039, -inf
        %1041 = vmax.xlane.f32.xlu0 %v1040
        %v1042 = vpop.xlane.xlu0 %1041
        %v1043 = vsub.f32 %v1039, %v1042
        %v1044 = vmul.f32 %v1043, 1.442695
        %v1045 = vpow.pop %v1044
        %v1046 = vsel %vm964, %v1045, 0.0
        %1047 = vadd.xlane.f32.xlu0 %v1046
        %v1048 = vpop.xlane.xlu0 %1047
        %v1049 = vrcp.pop %v1048
        %v1050 = vmul.f32 %v1045, %v1049
        %1051 = vrot.lane.b32.xlu0 %v958, 64
        %v1052 = vpop.permute.xlu0 %1051
        %v1055 = vsel %vm964, %v1050, 0
        %1057 = vmatprep.subr.mxu0 0.0
        %1058 = vmatpush1.msra.mxu0 0.0
        %1059 = vmatprep.subr.mxu0 0.0
        %1060 = vmatpush1.msra.mxu0 0.0
        %1061 = vmatprep.subr.mxu0 0.0
        %1062 = vmatpush1.msra.mxu0 0.0
        %1063 = vmatprep.subr.mxu0 0.0
        %1064 = vmatpush1.msra.mxu0 0.0
        %1065 = vmatprep.subr.mxu0 0.0
        %1066 = vmatpush1.msra.mxu0 0.0
        %1067 = vmatprep.subr.mxu0 0.0
        %1068 = vmatpush1.msra.mxu0 0.0
        %1069 = vmatprep.subr.mxu0 0.0
        %1070 = vmatpush1.msra.mxu0 0.0
        %1071 = vmatprep.subr.mxu0 0.0
        %1072 = vmatpush1.msra.mxu0 0.0
        %1073 = vmatprep.subr.mxu0 0.0
        %1074 = vmatpush1.msra.mxu0 0.0
        %1075 = vmatprep.subr.mxu0 0.0
        %1076 = vmatpush1.msra.mxu0 0.0
        %1077 = vmatprep.subr.mxu0 0.0
        %1078 = vmatpush1.msra.mxu0 0.0
        %1079 = vmatprep.subr.mxu0 0.0
        %1080 = vmatpush1.msra.mxu0 0.0
        %1081 = vmatprep.subr.mxu0 0.0
        %1082 = vmatpush1.msra.mxu0 0.0
        %1083 = vmatprep.subr.mxu0 0.0
        %1084 = vmatpush1.msra.mxu0 0.0
        %1085 = vmatprep.subr.mxu0 0.0
        %1086 = vmatpush1.msra.mxu0 0.0
        %1087 = vmatprep.subr.mxu0 0.0
        %1088 = vmatpush1.msra.mxu0 %v1052
        %1089 = vmatprep.subr.mxu0 0.0
        %1090 = vmatpush2.msra.mxu0 0.0
        %1091 = vmatprep.subr.mxu0 0.0
        %1092 = vmatpush2.msra.mxu0 0.0
        %1093 = vmatprep.subr.mxu0 0.0
        %1094 = vmatpush2.msra.mxu0 0.0
        %1095 = vmatprep.subr.mxu0 0.0
        %1096 = vmatpush2.msra.mxu0 0.0
        %1097 = vmatprep.subr.mxu0 0.0
        %1098 = vmatpush2.msra.mxu0 0.0
        %1099 = vmatprep.subr.mxu0 0.0
        %1100 = vmatpush2.msra.mxu0 0.0
        %1101 = vmatprep.subr.mxu0 0.0
        %1102 = vmatpush2.msra.mxu0 0.0
        %1103 = vmatprep.subr.mxu0 0.0
        %1104 = vmatpush2.msra.mxu0 0.0
        %1105 = vmatprep.subr.mxu0 0.0
        %1106 = vmatpush2.msra.mxu0 0.0
        %1107 = vmatprep.subr.mxu0 0.0
        %1108 = vmatpush2.msra.mxu0 0.0
        %1109 = vmatprep.subr.mxu0 0.0
        %1110 = vmatpush2.msra.mxu0 0.0
        %1111 = vmatprep.subr.mxu0 0.0
        %1112 = vmatpush2.msra.mxu0 0.0
        %1113 = vmatprep.subr.mxu0 0.0
        %1114 = vmatpush2.msra.mxu0 0.0
        %1115 = vmatprep.subr.mxu0 0.0
        %1116 = vmatpush2.msra.mxu0 0.0
        %1117 = vmatprep.subr.mxu0 0.0
        %1118 = vmatpush2.msra.mxu0 0.0
        %1119 = vmatprep.subr.mxu0 0.0
        %1120 = vmatpush2.msra.mxu0 0.0
        %1121 = vmatprep.mubr.f32.mxu0 0.0
        %1122 = vmatmul.mubr.f32.gmra.mxu0 %v1055
        %v1123 = vpop.f32.mrf.mxu0
        %v1124 = vadd.f32 0.0, %v1123
        %v1125 = vpop.f32.mrf.mxu0
        %1126 = vdwg.mxu0
        %1127 = vrot.lane.b32.xlu0 %v958, 120
        %v1128 = vpop.permute.xlu0 %1127
        %1129 = vrot.lane.b32.xlu0 %v958, 88
        %v1130 = vpop.permute.xlu0 %1129
        %v1131 = vsel %vm964, %v1128, 0
        %v1133 = vsel %vm964, %v1130, 0
        %1135 = vmatprep.subr.mxu0 0.0
        %1136 = vmatpush1.xpose.msra.mxu0 0.0
        %1137 = vmatprep.subr.mxu0 0.0
        %1138 = vmatpush1.xpose.msra.mxu0 0.0
        %1139 = vmatprep.subr.mxu0 0.0
        %1140 = vmatpush1.xpose.msra.mxu0 0.0
        %1141 = vmatprep.subr.mxu0 0.0
        %1142 = vmatpush1.xpose.msra.mxu0 0.0
        %1143 = vmatprep.subr.mxu0 0.0
        %1144 = vmatpush1.xpose.msra.mxu0 0.0
        %1145 = vmatprep.subr.mxu0 0.0
        %1146 = vmatpush1.xpose.msra.mxu0 0.0
        %1147 = vmatprep.subr.mxu0 0.0
        %1148 = vmatpush1.xpose.msra.mxu0 0.0
        %1149 = vmatprep.subr.mxu0 0.0
        %1150 = vmatpush1.xpose.msra.mxu0 0.0
        %1151 = vmatprep.subr.mxu0 0.0
        %1152 = vmatpush1.xpose.msra.mxu0 0.0
        %1153 = vmatprep.subr.mxu0 0.0
        %1154 = vmatpush1.xpose.msra.mxu0 0.0
        %1155 = vmatprep.subr.mxu0 0.0
        %1156 = vmatpush1.xpose.msra.mxu0 0.0
        %1157 = vmatprep.subr.mxu0 0.0
        %1158 = vmatpush1.xpose.msra.mxu0 0.0
        %1159 = vmatprep.subr.mxu0 0.0
        %1160 = vmatpush1.xpose.msra.mxu0 0.0
        %1161 = vmatprep.subr.mxu0 0.0
        %1162 = vmatpush1.xpose.msra.mxu0 0.0
        %1163 = vmatprep.subr.mxu0 0.0
        %1164 = vmatpush1.xpose.msra.mxu0 0.0
        %1165 = vmatprep.subr.mxu0 0.0
        %1166 = vmatpush1.xpose.msra.mxu0 %v1133
        %1167 = vmatprep.subr.mxu0 0.0
        %1168 = vmatpush2.xpose.msra.mxu0 0.0
        %1169 = vmatprep.subr.mxu0 0.0
        %1170 = vmatpush2.xpose.msra.mxu0 0.0
        %1171 = vmatprep.subr.mxu0 0.0
        %1172 = vmatpush2.xpose.msra.mxu0 0.0
        %1173 = vmatprep.subr.mxu0 0.0
        %1174 = vmatpush2.xpose.msra.mxu0 0.0
        %1175 = vmatprep.subr.mxu0 0.0
        %1176 = vmatpush2.xpose.msra.mxu0 0.0
        %1177 = vmatprep.subr.mxu0 0.0
        %1178 = vmatpush2.xpose.msra.mxu0 0.0
        %1179 = vmatprep.subr.mxu0 0.0
        %1180 = vmatpush2.xpose.msra.mxu0 0.0
        %1181 = vmatprep.subr.mxu0 0.0
        %1182 = vmatpush2.xpose.msra.mxu0 0.0
        %1183 = vmatprep.subr.mxu0 0.0
        %1184 = vmatpush2.xpose.msra.mxu0 0.0
        %1185 = vmatprep.subr.mxu0 0.0
        %1186 = vmatpush2.xpose.msra.mxu0 0.0
        %1187 = vmatprep.subr.mxu0 0.0
        %1188 = vmatpush2.xpose.msra.mxu0 0.0
        %1189 = vmatprep.subr.mxu0 0.0
        %1190 = vmatpush2.xpose.msra.mxu0 0.0
        %1191 = vmatprep.subr.mxu0 0.0
        %1192 = vmatpush2.xpose.msra.mxu0 0.0
        %1193 = vmatprep.subr.mxu0 0.0
        %1194 = vmatpush2.xpose.msra.mxu0 0.0
        %1195 = vmatprep.subr.mxu0 0.0
        %1196 = vmatpush2.xpose.msra.mxu0 0.0
        %1197 = vmatprep.subr.mxu0 0.0
        %1198 = vmatpush2.xpose.msra.mxu0 0.0
        %1199 = vmatprep.mubr.f32.mxu0 0.0
        %1200 = vmatmul.mubr.f32.gmra.mxu0 %v1131
        %v1201 = vpop.f32.mrf.mxu0
        %v1202 = vadd.f32 0.0, %v1201
        %v1203 = vpop.f32.mrf.mxu0
        %1204 = vdwg.mxu0
        %v1205 = vmul.f32 %v1202, 0.35355338
        %v1206 = vsel %vm964, %v1205, -inf
        %1207 = vmax.xlane.f32.xlu0 %v1206
        %v1208 = vpop.xlane.xlu0 %1207
        %v1209 = vsub.f32 %v1205, %v1208
        %v1210 = vmul.f32 %v1209, 1.442695
        %v1211 = vpow.pop %v1210
        %v1212 = vsel %vm964, %v1211, 0.0
        %1213 = vadd.xlane.f32.xlu0 %v1212
        %v1214 = vpop.xlane.xlu0 %1213
        %v1215 = vrcp.pop %v1214
        %v1216 = vmul.f32 %v1211, %v1215
        %1217 = vrot.lane.b32.xlu0 %v958, 56
        %v1218 = vpop.permute.xlu0 %1217
        %v1221 = vsel %vm964, %v1216, 0
        %1223 = vmatprep.subr.mxu0 0.0
        %1224 = vmatpush1.msra.mxu0 0.0
        %1225 = vmatprep.subr.mxu0 0.0
        %1226 = vmatpush1.msra.mxu0 0.0
        %1227 = vmatprep.subr.mxu0 0.0
        %1228 = vmatpush1.msra.mxu0 0.0
        %1229 = vmatprep.subr.mxu0 0.0
        %1230 = vmatpush1.msra.mxu0 0.0
        %1231 = vmatprep.subr.mxu0 0.0
        %1232 = vmatpush1.msra.mxu0 0.0
        %1233 = vmatprep.subr.mxu0 0.0
        %1234 = vmatpush1.msra.mxu0 0.0
        %1235 = vmatprep.subr.mxu0 0.0
        %1236 = vmatpush1.msra.mxu0 0.0
        %1237 = vmatprep.subr.mxu0 0.0
        %1238 = vmatpush1.msra.mxu0 0.0
        %1239 = vmatprep.subr.mxu0 0.0
        %1240 = vmatpush1.msra.mxu0 0.0
        %1241 = vmatprep.subr.mxu0 0.0
        %1242 = vmatpush1.msra.mxu0 0.0
        %1243 = vmatprep.subr.mxu0 0.0
        %1244 = vmatpush1.msra.mxu0 0.0
        %1245 = vmatprep.subr.mxu0 0.0
        %1246 = vmatpush1.msra.mxu0 0.0
        %1247 = vmatprep.subr.mxu0 0.0
        %1248 = vmatpush1.msra.mxu0 0.0
        %1249 = vmatprep.subr.mxu0 0.0
        %1250 = vmatpush1.msra.mxu0 0.0
        %1251 = vmatprep.subr.mxu0 0.0
        %1252 = vmatpush1.msra.mxu0 0.0
        %1253 = vmatprep.subr.mxu0 0.0
        %1254 = vmatpush1.msra.mxu0 %v1218
        %1255 = vmatprep.subr.mxu0 0.0
        %1256 = vmatpush2.msra.mxu0 0.0
        %1257 = vmatprep.subr.mxu0 0.0
        %1258 = vmatpush2.msra.mxu0 0.0
        %1259 = vmatprep.subr.mxu0 0.0
        %1260 = vmatpush2.msra.mxu0 0.0
        %1261 = vmatprep.subr.mxu0 0.0
        %1262 = vmatpush2.msra.mxu0 0.0
        %1263 = vmatprep.subr.mxu0 0.0
        %1264 = vmatpush2.msra.mxu0 0.0
        %1265 = vmatprep.subr.mxu0 0.0
        %1266 = vmatpush2.msra.mxu0 0.0
        %1267 = vmatprep.subr.mxu0 0.0
        %1268 = vmatpush2.msra.mxu0 0.0
        %1269 = vmatprep.subr.mxu0 0.0
        %1270 = vmatpush2.msra.mxu0 0.0
        %1271 = vmatprep.subr.mxu0 0.0
        %1272 = vmatpush2.msra.mxu0 0.0
        %1273 = vmatprep.subr.mxu0 0.0
        %1274 = vmatpush2.msra.mxu0 0.0
        %1275 = vmatprep.subr.mxu0 0.0
        %1276 = vmatpush2.msra.mxu0 0.0
        %1277 = vmatprep.subr.mxu0 0.0
        %1278 = vmatpush2.msra.mxu0 0.0
        %1279 = vmatprep.subr.mxu0 0.0
        %1280 = vmatpush2.msra.mxu0 0.0
        %1281 = vmatprep.subr.mxu0 0.0
        %1282 = vmatpush2.msra.mxu0 0.0
        %1283 = vmatprep.subr.mxu0 0.0
        %1284 = vmatpush2.msra.mxu0 0.0
        %1285 = vmatprep.subr.mxu0 0.0
        %1286 = vmatpush2.msra.mxu0 0.0
        %1287 = vmatprep.mubr.f32.mxu0 0.0
        %1288 = vmatmul.mubr.f32.gmra.mxu0 %v1221
        %v1289 = vpop.f32.mrf.mxu0
        %v1290 = vadd.f32 0.0, %v1289
        %v1291 = vpop.f32.mrf.mxu0
        %1292 = vdwg.mxu0
        %1293 = vrot.lane.b32.xlu0 %v958, 112
        %v1294 = vpop.permute.xlu0 %1293
        %1295 = vrot.lane.b32.xlu0 %v958, 80
        %v1296 = vpop.permute.xlu0 %1295
        %v1297 = vsel %vm964, %v1294, 0
        %v1299 = vsel %vm964, %v1296, 0
        %1301 = vmatprep.subr.mxu0 0.0
        %1302 = vmatpush1.xpose.msra.mxu0 0.0
        %1303 = vmatprep.subr.mxu0 0.0
        %1304 = vmatpush1.xpose.msra.mxu0 0.0
        %1305 = vmatprep.subr.mxu0 0.0
        %1306 = vmatpush1.xpose.msra.mxu0 0.0
        %1307 = vmatprep.subr.mxu0 0.0
        %1308 = vmatpush1.xpose.msra.mxu0 0.0
        %1309 = vmatprep.subr.mxu0 0.0
        %1310 = vmatpush1.xpose.msra.mxu0 0.0
        %1311 = vmatprep.subr.mxu0 0.0
        %1312 = vmatpush1.xpose.msra.mxu0 0.0
        %1313 = vmatprep.subr.mxu0 0.0
        %1314 = vmatpush1.xpose.msra.mxu0 0.0
        %1315 = vmatprep.subr.mxu0 0.0
        %1316 = vmatpush1.xpose.msra.mxu0 0.0
        %1317 = vmatprep.subr.mxu0 0.0
        %1318 = vmatpush1.xpose.msra.mxu0 0.0
        %1319 = vmatprep.subr.mxu0 0.0
        %1320 = vmatpush1.xpose.msra.mxu0 0.0
        %1321 = vmatprep.subr.mxu0 0.0
        %1322 = vmatpush1.xpose.msra.mxu0 0.0
        %1323 = vmatprep.subr.mxu0 0.0
        %1324 = vmatpush1.xpose.msra.mxu0 0.0
        %1325 = vmatprep.subr.mxu0 0.0
        %1326 = vmatpush1.xpose.msra.mxu0 0.0
        %1327 = vmatprep.subr.mxu0 0.0
        %1328 = vmatpush1.xpose.msra.mxu0 0.0
        %1329 = vmatprep.subr.mxu0 0.0
        %1330 = vmatpush1.xpose.msra.mxu0 0.0
        %1331 = vmatprep.subr.mxu0 0.0
        %1332 = vmatpush1.xpose.msra.mxu0 %v1299
        %1333 = vmatprep.subr.mxu0 0.0
        %1334 = vmatpush2.xpose.msra.mxu0 0.0
        %1335 = vmatprep.subr.mxu0 0.0
        %1336 = vmatpush2.xpose.msra.mxu0 0.0
        %1337 = vmatprep.subr.mxu0 0.0
        %1338 = vmatpush2.xpose.msra.mxu0 0.0
        %1339 = vmatprep.subr.mxu0 0.0
        %1340 = vmatpush2.xpose.msra.mxu0 0.0
        %1341 = vmatprep.subr.mxu0 0.0
        %1342 = vmatpush2.xpose.msra.mxu0 0.0
        %1343 = vmatprep.subr.mxu0 0.0
        %1344 = vmatpush2.xpose.msra.mxu0 0.0
        %1345 = vmatprep.subr.mxu0 0.0
        %1346 = vmatpush2.xpose.msra.mxu0 0.0
        %1347 = vmatprep.subr.mxu0 0.0
        %1348 = vmatpush2.xpose.msra.mxu0 0.0
        %1349 = vmatprep.subr.mxu0 0.0
        %1350 = vmatpush2.xpose.msra.mxu0 0.0
        %1351 = vmatprep.subr.mxu0 0.0
        %1352 = vmatpush2.xpose.msra.mxu0 0.0
        %1353 = vmatprep.subr.mxu0 0.0
        %1354 = vmatpush2.xpose.msra.mxu0 0.0
        %1355 = vmatprep.subr.mxu0 0.0
        %1356 = vmatpush2.xpose.msra.mxu0 0.0
        %1357 = vmatprep.subr.mxu0 0.0
        %1358 = vmatpush2.xpose.msra.mxu0 0.0
        %1359 = vmatprep.subr.mxu0 0.0
        %1360 = vmatpush2.xpose.msra.mxu0 0.0
        %1361 = vmatprep.subr.mxu0 0.0
        %1362 = vmatpush2.xpose.msra.mxu0 0.0
        %1363 = vmatprep.subr.mxu0 0.0
        %1364 = vmatpush2.xpose.msra.mxu0 0.0
        %1365 = vmatprep.mubr.f32.mxu0 0.0
        %1366 = vmatmul.mubr.f32.gmra.mxu0 %v1297
        %v1367 = vpop.f32.mrf.mxu0
        %v1368 = vadd.f32 0.0, %v1367
        %v1369 = vpop.f32.mrf.mxu0
        %1370 = vdwg.mxu0
        %v1371 = vmul.f32 %v1368, 0.35355338
        %v1372 = vsel %vm964, %v1371, -inf
        %1373 = vmax.xlane.f32.xlu0 %v1372
        %v1374 = vpop.xlane.xlu0 %1373
        %v1375 = vsub.f32 %v1371, %v1374
        %v1376 = vmul.f32 %v1375, 1.442695
        %v1377 = vpow.pop %v1376
        %v1378 = vsel %vm964, %v1377, 0.0
        %1379 = vadd.xlane.f32.xlu0 %v1378
        %v1380 = vpop.xlane.xlu0 %1379
        %v1381 = vrcp.pop %v1380
        %v1382 = vmul.f32 %v1377, %v1381
        %1383 = vrot.lane.b32.xlu0 %v958, 48
        %v1384 = vpop.permute.xlu0 %1383
        %v1387 = vsel %vm964, %v1382, 0
        %1389 = vmatprep.subr.mxu0 0.0
        %1390 = vmatpush1.msra.mxu0 0.0
        %1391 = vmatprep.subr.mxu0 0.0
        %1392 = vmatpush1.msra.mxu0 0.0
        %1393 = vmatprep.subr.mxu0 0.0
        %1394 = vmatpush1.msra.mxu0 0.0
        %1395 = vmatprep.subr.mxu0 0.0
        %1396 = vmatpush1.msra.mxu0 0.0
        %1397 = vmatprep.subr.mxu0 0.0
        %1398 = vmatpush1.msra.mxu0 0.0
        %1399 = vmatprep.subr.mxu0 0.0
        %1400 = vmatpush1.msra.mxu0 0.0
        %1401 = vmatprep.subr.mxu0 0.0
        %1402 = vmatpush1.msra.mxu0 0.0
        %1403 = vmatprep.subr.mxu0 0.0
        %1404 = vmatpush1.msra.mxu0 0.0
        %1405 = vmatprep.subr.mxu0 0.0
        %1406 = vmatpush1.msra.mxu0 0.0
        %1407 = vmatprep.subr.mxu0 0.0
        %1408 = vmatpush1.msra.mxu0 0.0
        %1409 = vmatprep.subr.mxu0 0.0
        %1410 = vmatpush1.msra.mxu0 0.0
        %1411 = vmatprep.subr.mxu0 0.0
        %1412 = vmatpush1.msra.mxu0 0.0
        %1413 = vmatprep.subr.mxu0 0.0
        %1414 = vmatpush1.msra.mxu0 0.0
        %1415 = vmatprep.subr.mxu0 0.0
        %1416 = vmatpush1.msra.mxu0 0.0
        %1417 = vmatprep.subr.mxu0 0.0
        %1418 = vmatpush1.msra.mxu0 0.0
        %1419 = vmatprep.subr.mxu0 0.0
        %1420 = vmatpush1.msra.mxu0 %v1384
        %1421 = vmatprep.subr.mxu0 0.0
        %1422 = vmatpush2.msra.mxu0 0.0
        %1423 = vmatprep.subr.mxu0 0.0
        %1424 = vmatpush2.msra.mxu0 0.0
        %1425 = vmatprep.subr.mxu0 0.0
        %1426 = vmatpush2.msra.mxu0 0.0
        %1427 = vmatprep.subr.mxu0 0.0
        %1428 = vmatpush2.msra.mxu0 0.0
        %1429 = vmatprep.subr.mxu0 0.0
        %1430 = vmatpush2.msra.mxu0 0.0
        %1431 = vmatprep.subr.mxu0 0.0
        %1432 = vmatpush2.msra.mxu0 0.0
        %1433 = vmatprep.subr.mxu0 0.0
        %1434 = vmatpush2.msra.mxu0 0.0
        %1435 = vmatprep.subr.mxu0 0.0
        %1436 = vmatpush2.msra.mxu0 0.0
        %1437 = vmatprep.subr.mxu0 0.0
        %1438 = vmatpush2.msra.mxu0 0.0
        %1439 = vmatprep.subr.mxu0 0.0
        %1440 = vmatpush2.msra.mxu0 0.0
        %1441 = vmatprep.subr.mxu0 0.0
        %1442 = vmatpush2.msra.mxu0 0.0
        %1443 = vmatprep.subr.mxu0 0.0
        %1444 = vmatpush2.msra.mxu0 0.0
        %1445 = vmatprep.subr.mxu0 0.0
        %1446 = vmatpush2.msra.mxu0 0.0
        %1447 = vmatprep.subr.mxu0 0.0
        %1448 = vmatpush2.msra.mxu0 0.0
        %1449 = vmatprep.subr.mxu0 0.0
        %1450 = vmatpush2.msra.mxu0 0.0
        %1451 = vmatprep.subr.mxu0 0.0
        %1452 = vmatpush2.msra.mxu0 0.0
        %1453 = vmatprep.mubr.f32.mxu0 0.0
        %1454 = vmatmul.mubr.f32.gmra.mxu0 %v1387
        %v1455 = vpop.f32.mrf.mxu0
        %v1456 = vadd.f32 0.0, %v1455
        %v1457 = vpop.f32.mrf.mxu0
        %1458 = vdwg.mxu0
        %1459 = vrot.lane.b32.xlu0 %v958, 104
        %v1460 = vpop.permute.xlu0 %1459
        %1461 = vrot.lane.b32.xlu0 %v958, 72
        %v1462 = vpop.permute.xlu0 %1461
        %v1463 = vsel %vm964, %v1460, 0
        %v1465 = vsel %vm964, %v1462, 0
        %1467 = vmatprep.subr.mxu0 0.0
        %1468 = vmatpush1.xpose.msra.mxu0 0.0
        %1469 = vmatprep.subr.mxu0 0.0
        %1470 = vmatpush1.xpose.msra.mxu0 0.0
        %1471 = vmatprep.subr.mxu0 0.0
        %1472 = vmatpush1.xpose.msra.mxu0 0.0
        %1473 = vmatprep.subr.mxu0 0.0
        %1474 = vmatpush1.xpose.msra.mxu0 0.0
        %1475 = vmatprep.subr.mxu0 0.0
        %1476 = vmatpush1.xpose.msra.mxu0 0.0
        %1477 = vmatprep.subr.mxu0 0.0
        %1478 = vmatpush1.xpose.msra.mxu0 0.0
        %1479 = vmatprep.subr.mxu0 0.0
        %1480 = vmatpush1.xpose.msra.mxu0 0.0
        %1481 = vmatprep.subr.mxu0 0.0
        %1482 = vmatpush1.xpose.msra.mxu0 0.0
        %1483 = vmatprep.subr.mxu0 0.0
        %1484 = vmatpush1.xpose.msra.mxu0 0.0
        %1485 = vmatprep.subr.mxu0 0.0
        %1486 = vmatpush1.xpose.msra.mxu0 0.0
        %1487 = vmatprep.subr.mxu0 0.0
        %1488 = vmatpush1.xpose.msra.mxu0 0.0
        %1489 = vmatprep.subr.mxu0 0.0
        %1490 = vmatpush1.xpose.msra.mxu0 0.0
        %1491 = vmatprep.subr.mxu0 0.0
        %1492 = vmatpush1.xpose.msra.mxu0 0.0
        %1493 = vmatprep.subr.mxu0 0.0
        %1494 = vmatpush1.xpose.msra.mxu0 0.0
        %1495 = vmatprep.subr.mxu0 0.0
        %1496 = vmatpush1.xpose.msra.mxu0 0.0
        %1497 = vmatprep.subr.mxu0 0.0
        %1498 = vmatpush1.xpose.msra.mxu0 %v1465
        %1499 = vmatprep.subr.mxu0 0.0
        %1500 = vmatpush2.xpose.msra.mxu0 0.0
        %1501 = vmatprep.subr.mxu0 0.0
        %1502 = vmatpush2.xpose.msra.mxu0 0.0
        %1503 = vmatprep.subr.mxu0 0.0
        %1504 = vmatpush2.xpose.msra.mxu0 0.0
        %1505 = vmatprep.subr.mxu0 0.0
        %1506 = vmatpush2.xpose.msra.mxu0 0.0
        %1507 = vmatprep.subr.mxu0 0.0
        %1508 = vmatpush2.xpose.msra.mxu0 0.0
        %1509 = vmatprep.subr.mxu0 0.0
        %1510 = vmatpush2.xpose.msra.mxu0 0.0
        %1511 = vmatprep.subr.mxu0 0.0
        %1512 = vmatpush2.xpose.msra.mxu0 0.0
        %1513 = vmatprep.subr.mxu0 0.0
        %1514 = vmatpush2.xpose.msra.mxu0 0.0
        %1515 = vmatprep.subr.mxu0 0.0
        %1516 = vmatpush2.xpose.msra.mxu0 0.0
        %1517 = vmatprep.subr.mxu0 0.0
        %1518 = vmatpush2.xpose.msra.mxu0 0.0
        %1519 = vmatprep.subr.mxu0 0.0
        %1520 = vmatpush2.xpose.msra.mxu0 0.0
        %1521 = vmatprep.subr.mxu0 0.0
        %1522 = vmatpush2.xpose.msra.mxu0 0.0
        %1523 = vmatprep.subr.mxu0 0.0
        %1524 = vmatpush2.xpose.msra.mxu0 0.0
        %1525 = vmatprep.subr.mxu0 0.0
        %1526 = vmatpush2.xpose.msra.mxu0 0.0
        %1527 = vmatprep.subr.mxu0 0.0
        %1528 = vmatpush2.xpose.msra.mxu0 0.0
        %1529 = vmatprep.subr.mxu0 0.0
        %1530 = vmatpush2.xpose.msra.mxu0 0.0
        %1531 = vmatprep.mubr.f32.mxu0 0.0
        %1532 = vmatmul.mubr.f32.gmra.mxu0 %v1463
        %v1533 = vpop.f32.mrf.mxu0
        %v1534 = vadd.f32 0.0, %v1533
        %v1535 = vpop.f32.mrf.mxu0
        %1536 = vdwg.mxu0
        %v1537 = vmul.f32 %v1534, 0.35355338
        %v1538 = vsel %vm964, %v1537, -inf
        %1539 = vmax.xlane.f32.xlu0 %v1538
        %v1540 = vpop.xlane.xlu0 %1539
        %v1541 = vsub.f32 %v1537, %v1540
        %v1542 = vmul.f32 %v1541, 1.442695
        %v1543 = vpow.pop %v1542
        %v1544 = vsel %vm964, %v1543, 0.0
        %1545 = vadd.xlane.f32.xlu0 %v1544
        %v1546 = vpop.xlane.xlu0 %1545
        %v1547 = vrcp.pop %v1546
        %v1548 = vmul.f32 %v1543, %v1547
        %1549 = vrot.lane.b32.xlu0 %v958, 40
        %v1550 = vpop.permute.xlu0 %1549
        %v1553 = vsel %vm964, %v1548, 0
        %1555 = vmatprep.subr.mxu0 0.0
        %1556 = vmatpush1.msra.mxu0 0.0
        %1557 = vmatprep.subr.mxu0 0.0
        %1558 = vmatpush1.msra.mxu0 0.0
        %1559 = vmatprep.subr.mxu0 0.0
        %1560 = vmatpush1.msra.mxu0 0.0
        %1561 = vmatprep.subr.mxu0 0.0
        %1562 = vmatpush1.msra.mxu0 0.0
        %1563 = vmatprep.subr.mxu0 0.0
        %1564 = vmatpush1.msra.mxu0 0.0
        %1565 = vmatprep.subr.mxu0 0.0
        %1566 = vmatpush1.msra.mxu0 0.0
        %1567 = vmatprep.subr.mxu0 0.0
        %1568 = vmatpush1.msra.mxu0 0.0
        %1569 = vmatprep.subr.mxu0 0.0
        %1570 = vmatpush1.msra.mxu0 0.0
        %1571 = vmatprep.subr.mxu0 0.0
        %1572 = vmatpush1.msra.mxu0 0.0
        %1573 = vmatprep.subr.mxu0 0.0
        %1574 = vmatpush1.msra.mxu0 0.0
        %1575 = vmatprep.subr.mxu0 0.0
        %1576 = vmatpush1.msra.mxu0 0.0
        %1577 = vmatprep.subr.mxu0 0.0
        %1578 = vmatpush1.msra.mxu0 0.0
        %1579 = vmatprep.subr.mxu0 0.0
        %1580 = vmatpush1.msra.mxu0 0.0
        %1581 = vmatprep.subr.mxu0 0.0
        %1582 = vmatpush1.msra.mxu0 0.0
        %1583 = vmatprep.subr.mxu0 0.0
        %1584 = vmatpush1.msra.mxu0 0.0
        %1585 = vmatprep.subr.mxu0 0.0
        %1586 = vmatpush1.msra.mxu0 %v1550
        %1587 = vmatprep.subr.mxu0 0.0
        %1588 = vmatpush2.msra.mxu0 0.0
        %1589 = vmatprep.subr.mxu0 0.0
        %1590 = vmatpush2.msra.mxu0 0.0
        %1591 = vmatprep.subr.mxu0 0.0
        %1592 = vmatpush2.msra.mxu0 0.0
        %1593 = vmatprep.subr.mxu0 0.0
        %1594 = vmatpush2.msra.mxu0 0.0
        %1595 = vmatprep.subr.mxu0 0.0
        %1596 = vmatpush2.msra.mxu0 0.0
        %1597 = vmatprep.subr.mxu0 0.0
        %1598 = vmatpush2.msra.mxu0 0.0
        %1599 = vmatprep.subr.mxu0 0.0
        %1600 = vmatpush2.msra.mxu0 0.0
        %1601 = vmatprep.subr.mxu0 0.0
        %1602 = vmatpush2.msra.mxu0 0.0
        %1603 = vmatprep.subr.mxu0 0.0
        %1604 = vmatpush2.msra.mxu0 0.0
        %1605 = vmatprep.subr.mxu0 0.0
        %1606 = vmatpush2.msra.mxu0 0.0
        %1607 = vmatprep.subr.mxu0 0.0
        %1608 = vmatpush2.msra.mxu0 0.0
        %1609 = vmatprep.subr.mxu0 0.0
        %1610 = vmatpush2.msra.mxu0 0.0
        %1611 = vmatprep.subr.mxu0 0.0
        %1612 = vmatpush2.msra.mxu0 0.0
        %1613 = vmatprep.subr.mxu0 0.0
        %1614 = vmatpush2.msra.mxu0 0.0
        %1615 = vmatprep.subr.mxu0 0.0
        %1616 = vmatpush2.msra.mxu0 0.0
        %1617 = vmatprep.subr.mxu0 0.0
        %1618 = vmatpush2.msra.mxu0 0.0
        %1619 = vmatprep.mubr.f32.mxu0 0.0
        %1620 = vmatmul.mubr.f32.gmra.mxu0 %v1553
        %v1621 = vpop.f32.mrf.mxu0
        %v1622 = vadd.f32 0.0, %v1621
        %v1623 = vpop.f32.mrf.mxu0
        %1624 = vdwg.mxu0
        %1626 = vrot.lane.b32.xlu0 %v1290, 8
        %v1627 = vpop.permute.xlu0 %1626
        %1630 = vrot.lane.b32.xlu0 %v1456, 16
        %v1631 = vpop.permute.xlu0 %1630
        %1634 = vrot.lane.b32.xlu0 %v1622, 24
        %v1635 = vpop.permute.xlu0 %1634
        %v1637 = vsel %vm964, %v1124, %v1627
        %vm1638 = vcmask 130048
        %v1639 = vsel %vm1638, %v1637, %v1631
        %vm1640 = vcmask 195584
        %v1641 = vsel %vm1640, %v1639, %v1635
        %v1642 = vld [vmem:[%s716] sm:$0xff]
        %v1643 = vld [vmem:[%s716 + $0x8] sm:$0xff]
        %v1644 = vld [vmem:[%s716 + $0x10] sm:$0xff]
        %v1645 = vld [vmem:[%s716 + $0x18] sm:$0xff]
        %v1646 = vld [vmem:[%s719] sm:$0x1]
        %v1648 = vlaneseq
        %v1649 = vshrl.u32 %v1648, 7
        %v1650 = vsub.s32 0, %v1649
        %v1651 = vrot.slane %v1646, %v1650
        %v1654 = vsel %vm887, %v1641, 0
        %1656 = vmatprep.subr.mxu0 0.0
        %1657 = vmatpush1.msra.mxu0 0.0
        %1658 = vmatprep.subr.mxu0 0.0
        %1659 = vmatpush1.msra.mxu0 0.0
        %1660 = vmatprep.subr.mxu0 0.0
        %1661 = vmatpush1.msra.mxu0 0.0
        %1662 = vmatprep.subr.mxu0 0.0
        %1663 = vmatpush1.msra.mxu0 0.0
        %1664 = vmatprep.subr.mxu0 0.0
        %1665 = vmatpush1.msra.mxu0 0.0
        %1666 = vmatprep.subr.mxu0 0.0
        %1667 = vmatpush1.msra.mxu0 0.0
        %1668 = vmatprep.subr.mxu0 0.0
        %1669 = vmatpush1.msra.mxu0 0.0
        %1670 = vmatprep.subr.mxu0 0.0
        %1671 = vmatpush1.msra.mxu0 0.0
        %1672 = vmatprep.subr.mxu0 0.0
        %1673 = vmatpush1.msra.mxu0 0.0
        %1674 = vmatprep.subr.mxu0 0.0
        %1675 = vmatpush1.msra.mxu0 0.0
        %1676 = vmatprep.subr.mxu0 0.0
        %1677 = vmatpush1.msra.mxu0 0.0
        %1678 = vmatprep.subr.mxu0 0.0
        %1679 = vmatpush1.msra.mxu0 0.0
        %1680 = vmatprep.subr.mxu0 0.0
        %1681 = vmatpush1.msra.mxu0 %v1645
        %1682 = vmatprep.subr.mxu0 0.0
        %1683 = vmatpush1.msra.mxu0 %v1644
        %1684 = vmatprep.subr.mxu0 0.0
        %1685 = vmatpush1.msra.mxu0 %v1643
        %1686 = vmatprep.subr.mxu0 0.0
        %1687 = vmatpush1.msra.mxu0 %v1642
        %1688 = vmatprep.subr.mxu0 0.0
        %1689 = vmatpush2.msra.mxu0 0.0
        %1690 = vmatprep.subr.mxu0 0.0
        %1691 = vmatpush2.msra.mxu0 0.0
        %1692 = vmatprep.subr.mxu0 0.0
        %1693 = vmatpush2.msra.mxu0 0.0
        %1694 = vmatprep.subr.mxu0 0.0
        %1695 = vmatpush2.msra.mxu0 0.0
        %1696 = vmatprep.subr.mxu0 0.0
        %1697 = vmatpush2.msra.mxu0 0.0
        %1698 = vmatprep.subr.mxu0 0.0
        %1699 = vmatpush2.msra.mxu0 0.0
        %1700 = vmatprep.subr.mxu0 0.0
        %1701 = vmatpush2.msra.mxu0 0.0
        %1702 = vmatprep.subr.mxu0 0.0
        %1703 = vmatpush2.msra.mxu0 0.0
        %1704 = vmatprep.subr.mxu0 0.0
        %1705 = vmatpush2.msra.mxu0 0.0
        %1706 = vmatprep.subr.mxu0 0.0
        %1707 = vmatpush2.msra.mxu0 0.0
        %1708 = vmatprep.subr.mxu0 0.0
        %1709 = vmatpush2.msra.mxu0 0.0
        %1710 = vmatprep.subr.mxu0 0.0
        %1711 = vmatpush2.msra.mxu0 0.0
        %1712 = vmatprep.subr.mxu0 0.0
        %1713 = vmatpush2.msra.mxu0 0.0
        %1714 = vmatprep.subr.mxu0 0.0
        %1715 = vmatpush2.msra.mxu0 0.0
        %1716 = vmatprep.subr.mxu0 0.0
        %1717 = vmatpush2.msra.mxu0 0.0
        %1718 = vmatprep.subr.mxu0 0.0
        %1719 = vmatpush2.msra.mxu0 0.0
        %1720 = vmatprep.mubr.f32.mxu0 0.0
        %1721 = vmatmul.mubr.f32.gmra.mxu0 %v1654
        %v1722 = vpop.f32.mrf.mxu0
        %v1723 = vadd.f32 %v1651, %v1722
        %v1724 = vpop.f32.mrf.mxu0
        %1725 = vdwg.mxu0
        %v1726 = vadd.f32 %v875, %v1723
        %v1727 = vld [vmem:[%s722] sm:$0x1]
        %v1728 = vld [vmem:[%s725] sm:$0x1]
        %v1729 = vsel %vm887, %v1726, 0.0
        %1730 = vadd.xlane.f32.xlu0 %v1729
        %v1731 = vpop.xlane.xlu0 %1730
        %v1732 = vrcp.pop 32.0
        %v1733 = vmul.f32 %v1731, %v1732
        %v1734 = vsub.f32 %v1726, %v1733
        %v1735 = vmul.f32 %v1734, %v1734
        %v1736 = vsel %vm887, %v1735, 0.0
        %1737 = vadd.xlane.f32.xlu0 %v1736
        %v1738 = vpop.xlane.xlu0 %1737
        %v1739 = vmul.f32 %v1738, %v1732
        %v1740 = vadd.f32 %v1739, 1e-05
        %v1741 = vrsqrt.pop %v1740
        %v1742 = vmul.f32 %v1734, %v1741
        %v1744 = vlaneseq
        %v1745 = vshrl.u32 %v1744, 7
        %v1746 = vsub.s32 0, %v1745
        %v1747 = vrot.slane %v1727, %v1746
        %v1749 = vmul.f32 %v1742, %v1747
        %v1751 = vlaneseq
        %v1752 = vshrl.u32 %v1751, 7
        %v1753 = vsub.s32 0, %v1752
        %v1754 = vrot.slane %v1728, %v1753
        %v1756 = vadd.f32 %v1749, %v1754
        %v1757 = vld [vmem:[%s730] sm:$0xff]
        %v1758 = vld [vmem:[%s730 + $0x8] sm:$0xff]
        %v1759 = vld [vmem:[%s730 + $0x10] sm:$0xff]
        %v1760 = vld [vmem:[%s730 + $0x18] sm:$0xff]
        %v1761 = vld [vmem:[%s733] sm:$0x1]
        %v1763 = vlaneseq
        %v1764 = vshrl.u32 %v1763, 7
        %v1765 = vsub.s32 0, %v1764
        %v1766 = vrot.slane %v1761, %v1765
        %v1769 = vsel %vm887, %v1756, 0
        %1771 = vmatprep.subr.mxu0 0.0
        %1772 = vmatpush1.msra.mxu0 0.0
        %1773 = vmatprep.subr.mxu0 0.0
        %1774 = vmatpush1.msra.mxu0 0.0
        %1775 = vmatprep.subr.mxu0 0.0
        %1776 = vmatpush1.msra.mxu0 0.0
        %1777 = vmatprep.subr.mxu0 0.0
        %1778 = vmatpush1.msra.mxu0 0.0
        %1779 = vmatprep.subr.mxu0 0.0
        %1780 = vmatpush1.msra.mxu0 0.0
        %1781 = vmatprep.subr.mxu0 0.0
        %1782 = vmatpush1.msra.mxu0 0.0
        %1783 = vmatprep.subr.mxu0 0.0
        %1784 = vmatpush1.msra.mxu0 0.0
        %1785 = vmatprep.subr.mxu0 0.0
        %1786 = vmatpush1.msra.mxu0 0.0
        %1787 = vmatprep.subr.mxu0 0.0
        %1788 = vmatpush1.msra.mxu0 0.0
        %1789 = vmatprep.subr.mxu0 0.0
        %1790 = vmatpush1.msra.mxu0 0.0
        %1791 = vmatprep.subr.mxu0 0.0
        %1792 = vmatpush1.msra.mxu0 0.0
        %1793 = vmatprep.subr.mxu0 0.0
        %1794 = vmatpush1.msra.mxu0 0.0
        %1795 = vmatprep.subr.mxu0 0.0
        %1796 = vmatpush1.msra.mxu0 %v1760
        %1797 = vmatprep.subr.mxu0 0.0
        %1798 = vmatpush1.msra.mxu0 %v1759
        %1799 = vmatprep.subr.mxu0 0.0
        %1800 = vmatpush1.msra.mxu0 %v1758
        %1801 = vmatprep.subr.mxu0 0.0
        %1802 = vmatpush1.msra.mxu0 %v1757
        %1803 = vmatprep.subr.mxu0 0.0
        %1804 = vmatpush2.msra.mxu0 0.0
        %1805 = vmatprep.subr.mxu0 0.0
        %1806 = vmatpush2.msra.mxu0 0.0
        %1807 = vmatprep.subr.mxu0 0.0
        %1808 = vmatpush2.msra.mxu0 0.0
        %1809 = vmatprep.subr.mxu0 0.0
        %1810 = vmatpush2.msra.mxu0 0.0
        %1811 = vmatprep.subr.mxu0 0.0
        %1812 = vmatpush2.msra.mxu0 0.0
        %1813 = vmatprep.subr.mxu0 0.0
        %1814 = vmatpush2.msra.mxu0 0.0
        %1815 = vmatprep.subr.mxu0 0.0
        %1816 = vmatpush2.msra.mxu0 0.0
        %1817 = vmatprep.subr.mxu0 0.0
        %1818 = vmatpush2.msra.mxu0 0.0
        %1819 = vmatprep.subr.mxu0 0.0
        %1820 = vmatpush2.msra.mxu0 0.0
        %1821 = vmatprep.subr.mxu0 0.0
        %1822 = vmatpush2.msra.mxu0 0.0
        %1823 = vmatprep.subr.mxu0 0.0
        %1824 = vmatpush2.msra.mxu0 0.0
        %1825 = vmatprep.subr.mxu0 0.0
        %1826 = vmatpush2.msra.mxu0 0.0
        %1827 = vmatprep.subr.mxu0 0.0
        %1828 = vmatpush2.msra.mxu0 0.0
        %1829 = vmatprep.subr.mxu0 0.0
        %1830 = vmatpush2.msra.mxu0 0.0
        %1831 = vmatprep.subr.mxu0 0.0
        %1832 = vmatpush2.msra.mxu0 0.0
        %1833 = vmatprep.subr.mxu0 0.0
        %1834 = vmatpush2.msra.mxu0 0.0
        %1835 = vmatprep.mubr.f32.mxu0 0.0
        %1836 = vmatmul.mubr.f32.gmra.mxu0 %v1769
        %v1837 = vpop.f32.mrf.mxu0
        %v1838 = vadd.f32 %v1766, %v1837
        %v1839 = vpop.f32.mrf.mxu0
        %1840 = vdwg.mxu0
        %v1841 = vmax.f32 %v1838, 0.0
        %v1842 = vld [vmem:[%s738] sm:$0xff]
        %v1843 = vld [vmem:[%s738 + $0x8] sm:$0xff]
        %v1844 = vld [vmem:[%s738 + $0x10] sm:$0xff]
        %v1845 = vld [vmem:[%s738 + $0x18] sm:$0xff]
        %v1846 = vld [vmem:[%s738 + $0x20] sm:$0xff]
        %v1847 = vld [vmem:[%s738 + $0x28] sm:$0xff]
        %v1848 = vld [vmem:[%s738 + $0x30] sm:$0xff]
        %v1849 = vld [vmem:[%s738 + $0x38] sm:$0xff]
        %v1850 = vld [vmem:[%s741] sm:$0x1]
        %v1852 = vlaneseq
        %v1853 = vshrl.u32 %v1852, 7
        %v1854 = vsub.s32 0, %v1853
        %v1855 = vrot.slane %v1850, %v1854
        %vm1857 = vcmask 523264
        %v1859 = vsel %vm1857, %v1841, 0
        %1861 = vmatprep.subr.mxu0 0.0
        %1862 = vmatpush1.msra.mxu0 0.0
        %1863 = vmatprep.subr.mxu0 0.0
        %1864 = vmatpush1.msra.mxu0 0.0
        %1865 = vmatprep.subr.mxu0 0.0
        %1866 = vmatpush1.msra.mxu0 0.0
        %1867 = vmatprep.subr.mxu0 0.0
        %1868 = vmatpush1.msra.mxu0 0.0
        %1869 = vmatprep.subr.mxu0 0.0
        %1870 = vmatpush1.msra.mxu0 0.0
        %1871 = vmatprep.subr.mxu0 0.0
        %1872 = vmatpush1.msra.mxu0 0.0
        %1873 = vmatprep.subr.mxu0 0.0
        %1874 = vmatpush1.msra.mxu0 0.0
        %1875 = vmatprep.subr.mxu0 0.0
        %1876 = vmatpush1.msra.mxu0 0.0
        %1877 = vmatprep.subr.mxu0 0.0
        %1878 = vmatpush1.msra.mxu0 %v1849
        %1879 = vmatprep.subr.mxu0 0.0
        %1880 = vmatpush1.msra.mxu0 %v1848
        %1881 = vmatprep.subr.mxu0 0.0
        %1882 = vmatpush1.msra.mxu0 %v1847
        %1883 = vmatprep.subr.mxu0 0.0
        %1884 = vmatpush1.msra.mxu0 %v1846
        %1885 = vmatprep.subr.mxu0 0.0
        %1886 = vmatpush1.msra.mxu0 %v1845
        %1887 = vmatprep.subr.mxu0 0.0
        %1888 = vmatpush1.msra.mxu0 %v1844
        %1889 = vmatprep.subr.mxu0 0.0
        %1890 = vmatpush1.msra.mxu0 %v1843
        %1891 = vmatprep.subr.mxu0 0.0
        %1892 = vmatpush1.msra.mxu0 %v1842
        %1893 = vmatprep.subr.mxu0 0.0
        %1894 = vmatpush2.msra.mxu0 0.0
        %1895 = vmatprep.subr.mxu0 0.0
        %1896 = vmatpush2.msra.mxu0 0.0
        %1897 = vmatprep.subr.mxu0 0.0
        %1898 = vmatpush2.msra.mxu0 0.0
        %1899 = vmatprep.subr.mxu0 0.0
        %1900 = vmatpush2.msra.mxu0 0.0
        %1901 = vmatprep.subr.mxu0 0.0
        %1902 = vmatpush2.msra.mxu0 0.0
        %1903 = vmatprep.subr.mxu0 0.0
        %1904 = vmatpush2.msra.mxu0 0.0
        %1905 = vmatprep.subr.mxu0 0.0
        %1906 = vmatpush2.msra.mxu0 0.0
        %1907 = vmatprep.subr.mxu0 0.0
        %1908 = vmatpush2.msra.mxu0 0.0
        %1909 = vmatprep.subr.mxu0 0.0
        %1910 = vmatpush2.msra.mxu0 0.0
        %1911 = vmatprep.subr.mxu0 0.0
        %1912 = vmatpush2.msra.mxu0 0.0
        %1913 = vmatprep.subr.mxu0 0.0
        %1914 = vmatpush2.msra.mxu0 0.0
        %1915 = vmatprep.subr.mxu0 0.0
        %1916 = vmatpush2.msra.mxu0 0.0
        %1917 = vmatprep.subr.mxu0 0.0
        %1918 = vmatpush2.msra.mxu0 0.0
        %1919 = vmatprep.subr.mxu0 0.0
        %1920 = vmatpush2.msra.mxu0 0.0
        %1921 = vmatprep.subr.mxu0 0.0
        %1922 = vmatpush2.msra.mxu0 0.0
        %1923 = vmatprep.subr.mxu0 0.0
        %1924 = vmatpush2.msra.mxu0 0.0
        %1925 = vmatprep.mubr.f32.mxu0 0.0
        %1926 = vmatmul.mubr.f32.gmra.mxu0 %v1859
        %v1927 = vpop.f32.mrf.mxu0
        %v1928 = vadd.f32 %v1855, %v1927
        %v1929 = vpop.f32.mrf.mxu0
        %1930 = vdwg.mxu0
        %v1931 = vadd.f32 %v1756, %v1928
        %v1932 = vld [vmem:[%s744] sm:$0x1]
        %v1933 = vld [vmem:[%s747] sm:$0x1]
        %v1934 = vsel %vm887, %v1931, 0.0
        %1935 = vadd.xlane.f32.xlu0 %v1934
        %v1936 = vpop.xlane.xlu0 %1935
        %v1937 = vmul.f32 %v1936, %v1732
        %v1938 = vsub.f32 %v1931, %v1937
        %v1939 = vmul.f32 %v1938, %v1938
        %v1940 = vsel %vm887, %v1939, 0.0
        %1941 = vadd.xlane.f32.xlu0 %v1940
        %v1942 = vpop.xlane.xlu0 %1941
        %v1943 = vmul.f32 %v1942, %v1732
        %v1944 = vadd.f32 %v1943, 1e-05
        %v1945 = vrsqrt.pop %v1944
        %v1946 = vmul.f32 %v1938, %v1945
        %v1948 = vlaneseq
        %v1949 = vshrl.u32 %v1948, 7
        %v1950 = vsub.s32 0, %v1949
        %v1951 = vrot.slane %v1932, %v1950
        %v1953 = vmul.f32 %v1946, %v1951
        %v1955 = vlaneseq
        %v1956 = vshrl.u32 %v1955, 7
        %v1957 = vsub.s32 0, %v1956
        %v1958 = vrot.slane %v1933, %v1957
        %v1960 = vadd.f32 %v1953, %v1958
        %1961 = vst.msk [vmem:[#allocation2] sm:$0xff] %vm887, %v1960
        %p1962 = scmp.eq.s32.totalorder %s36, 1
        // Predicated region
        $region93: #{tpu_custom_call.1} parent=87 // pred_check
          %p1963 = pneg %p1962
        $region94: #{tpu_custom_call.1} parent=87 // pred_check_branch
          %1965 = sbr.rel (%p1963) target = $region96
        $region95: #{tpu_custom_call.1} parent=87 // pred_region
          %1966 = vst.msk [vmem:[%s699] sm:$0xff] %vm887, %v1960
        $region96: #{tpu_custom_call.1} parent=87 // pred_fallthru
          _
        %s1967 = sand.u32 %s473, 1
        %s1968 = scalar_lea.sflag [#allocation4], %s1967
        %s1969 = sand.u32 %s473, 1
        %s1970 = smul.addr %s1969, 8
        %s1971 = scalar_lea.vmem [#allocation3], %s1970
        // Predicated region
        $region97: #{tpu_custom_call.1} parent=87 // pred_check
          %p1972 = pneg %p483
        $region98: #{tpu_custom_call.1} parent=87 // pred_check_branch
          %1974 = sbr.rel (%p1972) target = $region100
        $region99: #{tpu_custom_call.1} parent=87 // pred_region
          %s1976 = ssub.s32 128, 128
          %1977 = vsyncadd %s1968, %s1976
          %s1978 = smul.addr %s35, 128
          %s1979 = scalar_lea.hbm %s17, %s1978
          %s1981 = sshll.u32 %s1971, 4
          %s1982 = int_to_ptr.vmem [resolvable:$true] %s1981
          %1984 = dma.vmem_to_hbm [thread:$0]  %s1982, 128, %s1979, %s1968
        $region100: #{tpu_custom_call.1} parent=87 // pred_fallthru
          _
      $region88: #{tpu_custom_call.1} parent=5 // pred_fallthru
        _
      %p1985 = scmp.le.s32.totalorder 2, %s26
      // Predicated region
      $region101: #{tpu_custom_call.1} parent=5 // pred_check
        %p1986 = pneg %p1985
      $region102: #{tpu_custom_call.1} parent=5 // pred_check_branch
        %1988 = sbr.rel (%p1986) target = $region104
      $region103: #{tpu_custom_call.1} parent=5 // pred_region
        %s1989 = ssub.s32 %s26, 2
        // Predicated region
        $region105: #{tpu_custom_call.1} parent=103 // pred_check
          %p1990 = pneg %p489
        $region106: #{tpu_custom_call.1} parent=103 // pred_check_branch
          %1992 = sbr.rel (%p1990) target = $region108
        $region107: #{tpu_custom_call.1} parent=103 // pred_region
          %s1993 = sand.u32 %s474, 1
          %s1994 = scalar_lea.sflag [#allocation4], %s1993
          %s1995 = sand.u32 %s474, 1
          %s1996 = smul.addr %s1995, 8
          %s1997 = scalar_lea.vmem [#allocation3], %s1996
          %1998 = dma.done %s1994, 128
        $region108: #{tpu_custom_call.1} parent=103 // pred_fallthru
          _
      $region104: #{tpu_custom_call.1} parent=5 // pred_fallthru
        _
    $region6: #{tpu_custom_call.1} parent=1 // loop_footer
      %s30 = sadd.s32 1, %s26
    $region7: #{tpu_custom_call.1} parent=1 // loop_footer_branch
      %25 = sbr.rel target = $region3
    $region8: #{tpu_custom_call.1} parent=1 // loop_exit
      _
    %1999 = vsyncpa [#allocation4], 1
    %s2000 = scalar_lea.sflag [#allocation4], 1
    %2001 = vsyncpa %s2000, 1

</llo_original>
